<compile_context>
chip_gen: v5e
topology: v5e:2x2
jax: 0.10.0
libtpu: 0.0.40
codegen_flags: <defaults>
</compile_context>

<pallas_src>
import math

import jax
import jax.numpy as jnp
import numpy as np
from jax import lax
from jax.experimental import pallas as pl
from jax.experimental.pallas import tpu as pltpu

CNN_OUTPUT_DIM = 64
SEGMENT_LENGTH = 512   # small stand-in for the original 5120 (both have L % 4 == 0)
C1, K1 = 16, 7         # conv1: 1 -> 16 channels, kernel 7, pad 3
C2, K2 = 32, 5         # conv2: 16 -> 32 channels, kernel 5, pad 2


# --------------------------------------------------------------------------- kernels
def feat_kernel(xph_ref, w1s_ref, w2s_ref, b2_ref, out_ref):
    """Fused conv1+pool1+conv2+pool2 for a tile of `bt` batch elements.

    xph_ref : (bt, 4, Lq) bf16  rows 0..3 = input phases x[4q+m]
    w1s_ref : (4*C1, 24)  bf16  conv1 taps scattered over (lane-shift, phase) columns,
                                conv1 bias folded into column 12 (the in-kernel ones row)
    w2s_ref : (2*C2, 6*C1) bf16
    b2_ref  : (C2, 1)      f32
    out_ref : (bt, C2, Lq) bf16 pooled conv2 features (channel-major, ready to flatten)
    """
    bt = out_ref.shape[0]
    Lq = out_ref.shape[-1]

    # Hoisted lane iota / 0-1 masks for the +-1 zero-padded lane shifts.
    lane = lax.broadcasted_iota(jnp.int32, (1, Lq), 1)
    m_prev = (lane >= 1).astype(jnp.float32)          # valid lanes for out[q] = v[q-1]
    m_next = (lane < Lq - 1).astype(jnp.float32)      # valid lanes for out[q] = v[q+1]
    ones4 = jnp.ones((4, Lq), jnp.float32)            # carries the folded conv1 bias

    w1s = w1s_ref[...]
    w2s = w2s_ref[...]
    b2 = b2_ref[...]

    def shift_prev(v):  # out[:, q] = v[:, q-1], zero at q == 0       (non-negative shift)
        return pltpu.roll(v, shift=1, axis=1) * m_prev

    def shift_next(v):  # out[:, q] = v[:, q+1], zero at q == Lq-1    (non-negative shift)
        return pltpu.roll(v, shift=Lq - 1, axis=1) * m_next

    @pl.loop(0, bt)
    def _(b):
        # ---- conv1 + pool1: one MXU matmul over all (shift, phase) taps, then a
        #      row-block max over the two conv-output phases feeding each pooled sample.
        xp = jnp.concatenate([xph_ref[b].astype(jnp.float32), ones4], axis=0)   # (8, Lq)
        bank1 = jnp.concatenate([shift_prev(xp), xp, shift_next(xp)], axis=0)   # (24, Lq)
        z = jnp.dot(w1s, bank1.astype(jnp.bfloat16),
                    preferred_element_type=jnp.float32)                         # (4*C1, Lq)
        n1 = 2 * C1
        # rows 0..C1-1 -> pooled even positions, rows C1..2*C1-1 -> pooled odd positions
        p1 = jnp.maximum(jnp.maximum(z[:n1], z[n1:]), 0.0)                      # (2*C1, Lq)

        # ---- conv2 + pool2, same trick (p1 rows: [even-phase channels ; odd-phase]).
        bank2 = jnp.concatenate([shift_prev(p1), p1, shift_next(p1)], axis=0)   # (6*C1, Lq)
        u = jnp.dot(w2s, bank2.astype(jnp.bfloat16),
                    preferred_element_type=jnp.float32)                         # (2*C2, Lq)
        out_ref[b] = jnp.maximum(jnp.maximum(u[:C2], u[C2:]) + b2, 0.0
                                 ).astype(out_ref.dtype)


def fc_kernel(f_ref, w_ref, b_ref, o_ref, acc_ref):
    """Tiled FC: grid = (batch tiles, K tiles), f32 accumulator resident across K."""
    @pl.when(pl.program_id(1) == 0)
    def _():
        acc_ref[...] = jnp.zeros_like(acc_ref)
    acc_ref[...] += jnp.dot(f_ref[...], w_ref[...], preferred_element_type=jnp.float32)

    @pl.when(pl.program_id(1) == pl.num_programs(1) - 1)
    def _():
        o_ref[...] = acc_ref[...] + b_ref[...]


# ------------------------------------------------------------------- weight packing
def _pack_conv1(w1, b1):
    """Scatter conv1 taps (and bias) into W1S (4*C1, 24).

    bank1 row = (d+1)*8 + m (m in 0..3) holds x[4(q+d) + m] for d in {-1,0,+1}; rows
    (d+1)*8 + 4.. of each block are the in-kernel ones rows (only column 12, the center
    ones row, carries b1).  Output row blocks are ordered r = (0, 2, 1, 3) so that
    max(Z[:32], Z[32:]) directly yields [pool-even ; pool-odd] rows.
    """
    w1_2d = np.asarray(w1, np.float32)[:, 0, :]        # (C1, K1)
    b1 = np.asarray(b1, np.float32)
    w1s = np.zeros((4 * C1, 24), np.float32)
    for bi, r in enumerate((0, 2, 1, 3)):
        for c in range(C1):
            row = bi * C1 + c
            for t in range(K1):
                s = r + t - 3                          # x offset: x[4q + s]
                w1s[row, (s // 4 + 1) * 8 + (s % 4)] += w1_2d[c, t]
            w1s[row, 12] += b1[c]                      # folded bias (ones row column)
    return jnp.asarray(w1s, jnp.bfloat16)


def _pack_conv2(w2, b2):
    """Scatter conv2 taps into W2S (2*C2, 6*C1).

    bank2 row = (d+1)*2*C1 + m*C1 + c1 holds p1[c1, 2(q+d) + m] (d in {-1,0,+1}, m in
    {0,1}).  Output rows 0..C2-1 = conv output phase r=0, rows C2..2*C2-1 = phase r=1.
    """
    w2 = np.asarray(w2, np.float32)
    w2s = np.zeros((2 * C2, 6 * C1), np.float32)
    for r in range(2):
        for c2 in range(C2):
            row = r * C2 + c2
            for t in range(K2):
                s = r + t - 2                          # p1 offset: p1[., 2q + s]
                col = (s // 2 + 1) * (2 * C1) + (s % 2) * C1
                w2s[row, col:col + C1] += w2[c2, :, t]
    return jnp.asarray(w2s, jnp.bfloat16), jnp.asarray(b2, jnp.float32).reshape(C2, 1)


def prepare_params(params):
    """One-time parameter re-layout (keeps per-forward glue minimal)."""
    w1, b1, w2, b2, wf, bf = params
    w1s = _pack_conv1(w1, b1)
    w2s, b2c = _pack_conv2(w2, b2)
    wft = jnp.asarray(wf).T.astype(jnp.bfloat16)       # (C2*L/4, out_dim)
    bfr = jnp.asarray(bf).reshape(1, -1).astype(jnp.float32)
    return (w1s, w2s, b2c, wft, bfr)


# ------------------------------------------------------------------------- forward
def _pick_bt(batch):
    """Batch tile for the feature kernel: amortize per-step overhead, keep >=2 steps."""
    if batch <= 1:
        return 1
    return min(16, max(1, batch // 2))


def simple1dcnn_forward(x, prepped):
    w1s, w2s, b2c, wft, bfr = prepped
    B, cin, L = x.shape
    assert cin == 1 and L % 4 == 0
    Lq = L // 4
    fc_in = C2 * Lq
    out_dim = bfr.shape[-1]

    bt = _pick_bt(B)
    Bp = ((B + bt - 1) // bt) * bt

    # Layout glue: split x into its 4 interleaved phases (bf16) and pad batch to bt mult.
    xph = x[:, 0, :].reshape(B, Lq, 4).transpose(0, 2, 1).astype(jnp.bfloat16)  # (B,4,Lq)
    if Bp != B:
        xph = jnp.concatenate([xph, jnp.zeros((Bp - B, 4, Lq), jnp.bfloat16)], axis=0)

    featmap = pl.pallas_call(
        feat_kernel,
        out_shape=jax.ShapeDtypeStruct((Bp, C2, Lq), jnp.bfloat16),
        grid_spec=pltpu.PrefetchScalarGridSpec(
            num_scalar_prefetch=0,
            grid=(Bp // bt,),
            in_specs=[
                pl.BlockSpec((bt, 4, Lq), lambda i: (i, 0, 0)),
                pl.BlockSpec((4 * C1, 24), lambda i: (0, 0)),
                pl.BlockSpec((2 * C2, 6 * C1), lambda i: (0, 0)),
                pl.BlockSpec((C2, 1), lambda i: (0, 0)),
            ],
            out_specs=pl.BlockSpec((bt, C2, Lq), lambda i: (i, 0, 0)),
        ),
        compiler_params=pltpu.CompilerParams(dimension_semantics=("parallel",)),
    )(xph, w1s, w2s, b2c)

    # nn.Flatten: channel-major (c*Lq + q), matching the fc1 weight layout (free reshape).
    features = featmap.reshape(Bp, fc_in)

    # FC layer: batch tiles x K tiles, bf16 operands, f32 accumulation.
    tb = Bp if Bp <= 128 else 128
    Bp2 = ((Bp + tb - 1) // tb) * tb
    if Bp2 != Bp:
        features = jnp.concatenate(
            [features, jnp.zeros((Bp2 - Bp, fc_in), features.dtype)], axis=0)
    tk = 4096 if fc_in % 4096 == 0 else fc_in

    out = pl.pallas_call(
        fc_kernel,
        out_shape=jax.ShapeDtypeStruct((Bp2, out_dim), jnp.float32),
        grid_spec=pltpu.PrefetchScalarGridSpec(
            num_scalar_prefetch=0,
            grid=(Bp2 // tb, fc_in // tk),
            in_specs=[
                pl.BlockSpec((tb, tk), lambda i, k: (i, k)),
                pl.BlockSpec((tk, out_dim), lambda i, k: (k, 0)),
                pl.BlockSpec((1, out_dim), lambda i, k: (0, 0)),
            ],
            out_specs=pl.BlockSpec((tb, out_dim), lambda i, k: (i, 0)),
            scratch_shapes=[pltpu.VMEM((tb, out_dim), jnp.float32)],
        ),
        compiler_params=pltpu.CompilerParams(
            dimension_semantics=("parallel", "arbitrary")),
    )(features, wft, bfr)
    return out[:B]


# ----------------------------------------------------------------------- reference
def ref_forward(x, params):
    """Pure-JAX f32 reference mirroring the PyTorch forward."""
    w1, b1, w2, b2, wf, bf = params
    dn = ("NCW", "OIW", "NCW")
    y = lax.conv_general_dilated(x, w1, (1,), [(3, 3)], dimension_numbers=dn)
    y = jax.nn.relu(y + b1[None, :, None])
    Bx, C, Ly = y.shape
    y = jnp.max(y.reshape(Bx, C, Ly // 2, 2), axis=-1)
    y = lax.conv_general_dilated(y, w2, (1,), [(2, 2)], dimension_numbers=dn)
    y = jax.nn.relu(y + b2[None, :, None])
    Bx, C, Ly = y.shape
    y = jnp.max(y.reshape(Bx, C, Ly // 2, 2), axis=-1)
    return y.reshape(Bx, -1) @ wf.T + bf[None, :]


if __name__ == "__main__":
    B = 2
    L = SEGMENT_LENGTH
    fc_in = C2 * (L // 4)

    key = jax.random.PRNGKey(0)
    ks = jax.random.split(key, 7)

    def uinit(k, shape, fan_in):
        bound = 1.0 / math.sqrt(fan_in)
        return jax.random.uniform(k, shape, jnp.float32, -bound, bound)

    # deterministic synthetic parameters (PyTorch-like uniform init, same shapes)
    w1 = uinit(ks[0], (C1, 1, K1), 1 * K1)
    b1 = uinit(ks[1], (C1,), 1 * K1)
    w2 = uinit(ks[2], (C2, C1, K2), C1 * K2)
    b2 = uinit(ks[3], (C2,), C1 * K2)
    wf = uinit(ks[4], (CNN_OUTPUT_DIM, fc_in), fc_in)
    bf = uinit(ks[5], (CNN_OUTPUT_DIM,), fc_in)
    x = jax.random.normal(ks[6], (B, 1, L), jnp.float32)

    params = (w1, b1, w2, b2, wf, bf)
    prepped = prepare_params(params)

    out = jax.jit(simple1dcnn_forward)(x, prepped)
    out = jax.block_until_ready(out)

    ref = ref_forward(x, params)
    np.testing.assert_allclose(np.asarray(out), np.asarray(ref), rtol=5e-2, atol=5e-2)
    assert out.shape == (B, CNN_OUTPUT_DIM)
    print("KERNEL_OK")
</pallas_src>

<mosaic_0001>
module attributes {stable_mosaic.version = 11 : i64} {
  func.func @feat_kernel(%arg0: i32, %arg1: memref<1x4x128xbf16, #tpu.memory_space<vmem>>, %arg2: memref<64x24xbf16, #tpu.memory_space<vmem>>, %arg3: memref<64x96xbf16, #tpu.memory_space<vmem>>, %arg4: memref<32x1xf32, #tpu.memory_space<vmem>>, %arg5: memref<1x32x128xbf16, #tpu.memory_space<vmem>>) attributes {dimension_semantics = [#tpu.dimension_semantics<parallel>], iteration_bounds = array<i64: 2>, scalar_prefetch = 0 : i64, scratch_operands = 0 : i64, tpu.core_type = #tpu.core_type<tc>, window_params = [{transform_indices = @transform_0, window_bounds = array<i64: 1, 4, 128>}, {pipeline_mode = #tpu.pipeline_mode<synchronous>, transform_indices = @transform_1, window_bounds = array<i64: 64, 24>}, {pipeline_mode = #tpu.pipeline_mode<synchronous>, transform_indices = @transform_2, window_bounds = array<i64: 64, 96>}, {pipeline_mode = #tpu.pipeline_mode<synchronous>, transform_indices = @transform_3, window_bounds = array<i64: 32, 1>}, {transform_indices = @transform_4, window_bounds = array<i64: 1, 32, 128>}]} {
    %0 = tpu.iota {dimensions = array<i32: 1>} : vector<1x128xi32>
    %c1_i32 = arith.constant 1 : i32
    %1 = vector.broadcast %c1_i32 : i32 to vector<1x128xi32>
    %2 = arith.cmpi sge, %0, %1 : vector<1x128xi32>
    %3 = arith.extui %2 : vector<1x128xi1> to vector<1x128xi32>
    %4 = arith.sitofp %3 : vector<1x128xi32> to vector<1x128xf32>
    %c127_i32 = arith.constant 127 : i32
    %5 = vector.broadcast %c127_i32 : i32 to vector<1x128xi32>
    %6 = arith.cmpi slt, %0, %5 : vector<1x128xi32>
    %7 = arith.extui %6 : vector<1x128xi1> to vector<1x128xi32>
    %8 = arith.sitofp %7 : vector<1x128xi32> to vector<1x128xf32>
    %cst = arith.constant 1.000000e+00 : f32
    %9 = vector.broadcast %cst : f32 to vector<4x128xf32>
    %c0 = arith.constant 0 : index
    %c0_0 = arith.constant 0 : index
    %10 = vector.load %arg2[%c0, %c0_0] : memref<64x24xbf16, #tpu.memory_space<vmem>>, vector<64x24xbf16>
    %c0_1 = arith.constant 0 : index
    %c0_2 = arith.constant 0 : index
    %11 = vector.load %arg3[%c0_1, %c0_2] : memref<64x96xbf16, #tpu.memory_space<vmem>>, vector<64x96xbf16>
    %c0_3 = arith.constant 0 : index
    %c0_4 = arith.constant 0 : index
    %12 = vector.load %arg4[%c0_3, %c0_4] : memref<32x1xf32, #tpu.memory_space<vmem>>, vector<32x1xf32>
    %c0_i32 = arith.constant 0 : i32
    %c1_i32_5 = arith.constant 1 : i32
    %13 = arith.muli %c0_i32, %c1_i32_5 : i32
    %c0_i32_6 = arith.constant 0 : i32
    %14 = arith.addi %c0_i32_6, %13 : i32
    %15 = arith.index_cast %14 : i32 to index
    %c0_7 = arith.constant 0 : index
    %c0_8 = arith.constant 0 : index
    %16 = vector.load %arg1[%15, %c0_7, %c0_8] : memref<1x4x128xbf16, #tpu.memory_space<vmem>>, vector<1x4x128xbf16>
    %17 = vector.shape_cast %16 : vector<1x4x128xbf16> to vector<4x128xbf16>
    %18 = arith.extf %17 : vector<4x128xbf16> to vector<4x128xf32>
    %19 = tpu.concatenate %18, %9 in 0 : vector<4x128xf32>, vector<4x128xf32> -> vector<8x128xf32>
    %c1_i32_9 = arith.constant 1 : i32
    %20 = tpu.dynamic_rotate %19 by %c1_i32_9 dim 1 : vector<8x128xf32>, i32 -> vector<8x128xf32>
    %21 = vector.broadcast %4 : vector<1x128xf32> to vector<8x128xf32>
    %22 = arith.mulf %20, %21 : vector<8x128xf32>
    %c127_i32_10 = arith.constant 127 : i32
    %23 = tpu.dynamic_rotate %19 by %c127_i32_10 dim 1 : vector<8x128xf32>, i32 -> vector<8x128xf32>
    %24 = vector.broadcast %8 : vector<1x128xf32> to vector<8x128xf32>
    %25 = arith.mulf %23, %24 : vector<8x128xf32>
    %26 = tpu.concatenate %22, %19, %25 in 0 : vector<8x128xf32>, vector<8x128xf32>, vector<8x128xf32> -> vector<24x128xf32>
    %27 = arith.truncf %26 : vector<24x128xf32> to vector<24x128xbf16>
    %cst_11 = arith.constant dense<0.000000e+00> : vector<64x128xf32>
    %28 = tpu.matmul %10, %27, %cst_11 {dimension_numbers = #tpu.dot_dimension_numbers<[1], [0], [0], [1], [0, 0, 1, 1], [], []>} : vector<64x24xbf16>, vector<24x128xbf16>, vector<64x128xf32> -> vector<64x128xf32>
    %29 = vector.extract_strided_slice %28 {offsets = [0, 0], sizes = [32, 128], strides = [1, 1]} : vector<64x128xf32> to vector<32x128xf32>
    %30 = vector.extract_strided_slice %28 {offsets = [32, 0], sizes = [32, 128], strides = [1, 1]} : vector<64x128xf32> to vector<32x128xf32>
    %31 = arith.maximumf %29, %30 : vector<32x128xf32>
    %cst_12 = arith.constant 0.000000e+00 : f32
    %32 = vector.broadcast %cst_12 : f32 to vector<32x128xf32>
    %33 = arith.maximumf %31, %32 : vector<32x128xf32>
    %c1_i32_13 = arith.constant 1 : i32
    %34 = tpu.dynamic_rotate %33 by %c1_i32_13 dim 1 : vector<32x128xf32>, i32 -> vector<32x128xf32>
    %35 = vector.broadcast %4 : vector<1x128xf32> to vector<32x128xf32>
    %36 = arith.mulf %34, %35 : vector<32x128xf32>
    %c127_i32_14 = arith.constant 127 : i32
    %37 = tpu.dynamic_rotate %33 by %c127_i32_14 dim 1 : vector<32x128xf32>, i32 -> vector<32x128xf32>
    %38 = vector.broadcast %8 : vector<1x128xf32> to vector<32x128xf32>
    %39 = arith.mulf %37, %38 : vector<32x128xf32>
    %40 = tpu.concatenate %36, %33, %39 in 0 : vector<32x128xf32>, vector<32x128xf32>, vector<32x128xf32> -> vector<96x128xf32>
    %41 = arith.truncf %40 : vector<96x128xf32> to vector<96x128xbf16>
    %cst_15 = arith.constant dense<0.000000e+00> : vector<64x128xf32>
    %42 = tpu.matmul %11, %41, %cst_15 {dimension_numbers = #tpu.dot_dimension_numbers<[1], [0], [0], [1], [0, 0, 1, 1], [], []>} : vector<64x96xbf16>, vector<96x128xbf16>, vector<64x128xf32> -> vector<64x128xf32>
    %43 = vector.extract_strided_slice %42 {offsets = [0, 0], sizes = [32, 128], strides = [1, 1]} : vector<64x128xf32> to vector<32x128xf32>
    %44 = vector.extract_strided_slice %42 {offsets = [32, 0], sizes = [32, 128], strides = [1, 1]} : vector<64x128xf32> to vector<32x128xf32>
    %45 = arith.maximumf %43, %44 : vector<32x128xf32>
    %46 = vector.broadcast %12 : vector<32x1xf32> to vector<32x128xf32>
    %47 = arith.addf %45, %46 : vector<32x128xf32>
    %cst_16 = arith.constant 0.000000e+00 : f32
    %48 = vector.broadcast %cst_16 : f32 to vector<32x128xf32>
    %49 = arith.maximumf %47, %48 : vector<32x128xf32>
    %50 = arith.truncf %49 : vector<32x128xf32> to vector<32x128xbf16>
    %51 = arith.index_cast %14 : i32 to index
    %c0_17 = arith.constant 0 : index
    %c0_18 = arith.constant 0 : index
    %52 = vector.load %arg5[%51, %c0_17, %c0_18] : memref<1x32x128xbf16, #tpu.memory_space<vmem>>, vector<1x32x128xbf16>
    %53 = vector.shape_cast %52 : vector<1x32x128xbf16> to vector<32x128xbf16>
    %54 = vector.shape_cast %50 : vector<32x128xbf16> to vector<1x32x128xbf16>
    tpu.vector_store %arg5[%51, %c0_17, %c0_18], %54 {strides = array<i32>} : memref<1x32x128xbf16, #tpu.memory_space<vmem>>, vector<1x32x128xbf16>,
    %c1_i32_19 = arith.constant 1 : i32
    return
  }
  func.func @transform_0(%arg0: i32) -> (i32, i32, i32) {
    %c0_i32 = arith.constant 0 : i32
    %c0_i32_0 = arith.constant 0 : i32
    %c0_i32_1 = arith.constant 0 : i32
    return %arg0, %c0_i32, %c0_i32_0 : i32, i32, i32
  }
  func.func @transform_1(%arg0: i32) -> (i32, i32) {
    %c0_i32 = arith.constant 0 : i32
    %c0_i32_0 = arith.constant 0 : i32
    %c0_i32_1 = arith.constant 0 : i32
    return %c0_i32, %c0_i32_0 : i32, i32
  }
  func.func @transform_2(%arg0: i32) -> (i32, i32) {
    %c0_i32 = arith.constant 0 : i32
    %c0_i32_0 = arith.constant 0 : i32
    %c0_i32_1 = arith.constant 0 : i32
    return %c0_i32, %c0_i32_0 : i32, i32
  }
  func.func @transform_3(%arg0: i32) -> (i32, i32) {
    %c0_i32 = arith.constant 0 : i32
    %c0_i32_0 = arith.constant 0 : i32
    %c0_i32_1 = arith.constant 0 : i32
    return %c0_i32, %c0_i32_0 : i32, i32
  }
  func.func @transform_4(%arg0: i32) -> (i32, i32, i32) {
    %c0_i32 = arith.constant 0 : i32
    %c0_i32_0 = arith.constant 0 : i32
    %c0_i32_1 = arith.constant 0 : i32
    return %arg0, %c0_i32, %c0_i32_0 : i32, i32, i32
  }
}

module attributes {stable_mosaic.version = 11 : i64} {
  func.func @fc_kernel(%arg0: i32, %arg1: i32, %arg2: memref<2x4096xbf16, #tpu.memory_space<vmem>>, %arg3: memref<4096x64xbf16, #tpu.memory_space<vmem>>, %arg4: memref<1x64xf32, #tpu.memory_space<vmem>>, %arg5: memref<2x64xf32, #tpu.memory_space<vmem>>, %arg6: memref<2x64xf32, #tpu.memory_space<vmem>>) attributes {dimension_semantics = [#tpu.dimension_semantics<parallel>, #tpu.dimension_semantics<arbitrary>], iteration_bounds = array<i64: 1, 1>, scalar_prefetch = 0 : i64, scratch_operands = 1 : i64, tpu.core_type = #tpu.core_type<tc>, window_params = [{transform_indices = @transform_0, window_bounds = array<i64: 2, 4096>}, {transform_indices = @transform_1, window_bounds = array<i64: 4096, 64>}, {pipeline_mode = #tpu.pipeline_mode<synchronous>, transform_indices = @transform_2, window_bounds = array<i64: 1, 64>}, {transform_indices = @transform_3, window_bounds = array<i64: 2, 64>}]} {
    %c0_i32 = arith.constant 0 : i32
    %0 = arith.cmpi eq, %arg1, %c0_i32 : i32
    %1 = arith.extui %0 : i1 to i32
    %c0_i32_0 = arith.constant 0 : i32
    %2 = arith.cmpi ne, %1, %c0_i32_0 : i32
    scf.if %2 {
      %cst_10 = arith.constant 0.000000e+00 : f32
      %12 = vector.broadcast %cst_10 : f32 to vector<2x64xf32>
      %c0_11 = arith.constant 0 : index
      %c0_12 = arith.constant 0 : index
      %13 = vector.load %arg6[%c0_11, %c0_12] : memref<2x64xf32, #tpu.memory_space<vmem>>, vector<2x64xf32>
      tpu.vector_store %arg6[%c0_11, %c0_12], %12 {strides = array<i32>} : memref<2x64xf32, #tpu.memory_space<vmem>>, vector<2x64xf32>,
    } else {
    }
    %c0 = arith.constant 0 : index
    %c0_1 = arith.constant 0 : index
    %3 = vector.load %arg6[%c0, %c0_1] : memref<2x64xf32, #tpu.memory_space<vmem>>, vector<2x64xf32>
    %c0_2 = arith.constant 0 : index
    %c0_3 = arith.constant 0 : index
    %4 = vector.load %arg2[%c0_2, %c0_3] : memref<2x4096xbf16, #tpu.memory_space<vmem>>, vector<2x4096xbf16>
    %c0_4 = arith.constant 0 : index
    %c0_5 = arith.constant 0 : index
    %5 = vector.load %arg3[%c0_4, %c0_5] : memref<4096x64xbf16, #tpu.memory_space<vmem>>, vector<4096x64xbf16>
    %cst = arith.constant dense<0.000000e+00> : vector<2x64xf32>
    %6 = tpu.matmul %4, %5, %cst {dimension_numbers = #tpu.dot_dimension_numbers<[1], [0], [0], [1], [0, 0, 1, 1], [], []>} : vector<2x4096xbf16>, vector<4096x64xbf16>, vector<2x64xf32> -> vector<2x64xf32>
    %7 = arith.addf %3, %6 : vector<2x64xf32>
    %c0_6 = arith.constant 0 : index
    %c0_7 = arith.constant 0 : index
    %8 = vector.load %arg6[%c0_6, %c0_7] : memref<2x64xf32, #tpu.memory_space<vmem>>, vector<2x64xf32>
    tpu.vector_store %arg6[%c0_6, %c0_7], %7 {strides = array<i32>} : memref<2x64xf32, #tpu.memory_space<vmem>>, vector<2x64xf32>,
    %c0_i32_8 = arith.constant 0 : i32
    %9 = arith.cmpi eq, %arg1, %c0_i32_8 : i32
    %10 = arith.extui %9 : i1 to i32
    %c0_i32_9 = arith.constant 0 : i32
    %11 = arith.cmpi ne, %10, %c0_i32_9 : i32
    scf.if %11 {
      %c0_10 = arith.constant 0 : index
      %c0_11 = arith.constant 0 : index
      %12 = vector.load %arg6[%c0_10, %c0_11] : memref<2x64xf32, #tpu.memory_space<vmem>>, vector<2x64xf32>
      %c0_12 = arith.constant 0 : index
      %c0_13 = arith.constant 0 : index
      %13 = vector.load %arg4[%c0_12, %c0_13] : memref<1x64xf32, #tpu.memory_space<vmem>>, vector<1x64xf32>
      %14 = vector.broadcast %13 : vector<1x64xf32> to vector<2x64xf32>
      %15 = arith.addf %12, %14 : vector<2x64xf32>
      %c0_14 = arith.constant 0 : index
      %c0_15 = arith.constant 0 : index
      %16 = vector.load %arg5[%c0_14, %c0_15] : memref<2x64xf32, #tpu.memory_space<vmem>>, vector<2x64xf32>
      tpu.vector_store %arg5[%c0_14, %c0_15], %15 {strides = array<i32>} : memref<2x64xf32, #tpu.memory_space<vmem>>, vector<2x64xf32>,
    } else {
    }
    return
  }
  func.func @transform_0(%arg0: i32, %arg1: i32) -> (i32, i32) {
    %c0_i32 = arith.constant 0 : i32
    return %arg0, %arg1 : i32, i32
  }
  func.func @transform_1(%arg0: i32, %arg1: i32) -> (i32, i32) {
    %c0_i32 = arith.constant 0 : i32
    %c0_i32_0 = arith.constant 0 : i32
    return %arg1, %c0_i32 : i32, i32
  }
  func.func @transform_2(%arg0: i32, %arg1: i32) -> (i32, i32) {
    %c0_i32 = arith.constant 0 : i32
    %c0_i32_0 = arith.constant 0 : i32
    %c0_i32_1 = arith.constant 0 : i32
    return %c0_i32, %c0_i32_0 : i32, i32
  }
  func.func @transform_3(%arg0: i32, %arg1: i32) -> (i32, i32) {
    %c0_i32 = arith.constant 0 : i32
    %c0_i32_0 = arith.constant 0 : i32
    return %arg0, %c0_i32 : i32, i32
  }
}

</mosaic_0001>

<llo_original>
// kernel: simple1dcnn_forward.2
$region0: #{simple1dcnn_forward.2}
  #allocation0 [shape = 'u32[]', space=smem, size = 0x4, offset = 0x4, fixed_abs, tag = 'smem constant byte address 0x4 - core index']
  #allocation1 [shape = 'u32[72,128]{1,0:T(1,128)}', space=vmem, size = 0x9000, scoped, tag = 'internal scratch']
  %s0 = inlined_call_operand.vmem [shape: bf16[2,4,128], index: 0, kind: input, shape index: {}]
  %s1 = inlined_call_operand.vmem [shape: bf16[64,24], index: 1, kind: input, shape index: {}]
  %s2 = inlined_call_operand.vmem [shape: bf16[64,96], index: 2, kind: input, shape index: {}]
  %s3 = inlined_call_operand.vmem [shape: f32[32,1], index: 3, kind: input, shape index: {}]
  %s4 = inlined_call_operand.vmem [shape: bf16[2,32,128], index: 4, kind: output, shape index: {}]
  %s5 = sld [smem:[#allocation0]]
  $region49: #{simple1dcnn_forward.2} parent=0
    _
  %s7 = ssub.s32 1, %s5
  %s8 = scalar_select 0, %s7, %s5
  loop: start=0, step=1, limit=4
  $region2: #{simple1dcnn_forward.2} parent=0 // loop_pre_header
    _
  $region3: #{simple1dcnn_forward.2} parent=0 // loop_header
    %s10 = sphi 0, %s14
    %p11 = scmp.ge.s32.totalorder %s10, 4
    %s20 = sphi 0, %s22
    %s23 = sphi 0, %s20
    %s24 = sphi 0, %s23
    %s40 = sphi 0, %s24
    %s44 = sphi 0, %s44
    %s46 = sphi 0, %s44
    %s47 = sphi 0, %s46
    %s61 = sphi 0, %s47
    %s65 = sphi 0, %s65
    %s67 = sphi 0, %s65
    %s68 = sphi 0, %s67
    %s82 = sphi 0, %s68
    %s86 = sphi 0, %s86
    %s88 = sphi 0, %s86
    %s89 = sphi 0, %s88
    %s103 = sphi 0, %s89
    %s109 = sphi 0, %s111
    %s112 = sphi 0, %s109
    %s113 = sphi 0, %s112
    %s129 = sphi 0, %s113
  $region4: #{simple1dcnn_forward.2} parent=0 // loop_header_branch
    %13 = sbr.rel (%p11) target = $region8
  $region5: #{simple1dcnn_forward.2} parent=0 // loop_body
    %s15 = ssub.s32 %s10, 1
    %s16 = ssub.s32 %s10, 2
    %s17 = sadd.s32 %s10, 1
    %s18 = ssub.s32 %s10, %s17
    %p19 = scmp.eq.s32.totalorder %s18, 0
    %s21 = sadd.s32 %s20, 1
    %s22 = scalar_select %p19, %s20, %s21
    %p25 = pneg %p19
    %p26 = scmp.eq.s32.totalorder %s10, 1
    %p27 = por %p25, %p26
    %p28 = scmp.ne.s32.totalorder %s20, %s23
    %p29 = scmp.eq.s32.totalorder %s10, 0
    %p30 = por %p28, %p29
    %p31 = scmp.ne.s32.totalorder %s20, %s23
    %p32 = scmp.eq.s32.totalorder %s15, 1
    %p33 = por %p31, %p32
    %p34 = scmp.ne.s32.totalorder %s23, %s24
    %p35 = scmp.eq.s32.totalorder %s15, 0
    %p36 = por %p34, %p35
    %p37 = scmp.ne.s32.totalorder %s23, %s24
    %p38 = scmp.eq.s32.totalorder %s16, 1
    %p39 = por %p37, %p38
    %p41 = scmp.ne.s32.totalorder %s24, %s40
    %p42 = scmp.eq.s32.totalorder %s16, 0
    %p43 = por %p41, %p42
    %s45 = sadd.s32 %s44, 1
    %p48 = scmp.eq.s32.totalorder %s10, 1
    %p49 = scmp.ne.s32.totalorder %s44, %s46
    %p50 = scmp.eq.s32.totalorder %s10, 0
    %p51 = por %p49, %p50
    %p52 = scmp.ne.s32.totalorder %s44, %s46
    %p53 = scmp.eq.s32.totalorder %s15, 1
    %p54 = por %p52, %p53
    %p55 = scmp.ne.s32.totalorder %s46, %s47
    %p56 = scmp.eq.s32.totalorder %s15, 0
    %p57 = por %p55, %p56
    %p58 = scmp.ne.s32.totalorder %s46, %s47
    %p59 = scmp.eq.s32.totalorder %s16, 1
    %p60 = por %p58, %p59
    %p62 = scmp.ne.s32.totalorder %s47, %s61
    %p63 = scmp.eq.s32.totalorder %s16, 0
    %p64 = por %p62, %p63
    %s66 = sadd.s32 %s65, 1
    %p69 = scmp.eq.s32.totalorder %s10, 1
    %p70 = scmp.ne.s32.totalorder %s65, %s67
    %p71 = scmp.eq.s32.totalorder %s10, 0
    %p72 = por %p70, %p71
    %p73 = scmp.ne.s32.totalorder %s65, %s67
    %p74 = scmp.eq.s32.totalorder %s15, 1
    %p75 = por %p73, %p74
    %p76 = scmp.ne.s32.totalorder %s67, %s68
    %p77 = scmp.eq.s32.totalorder %s15, 0
    %p78 = por %p76, %p77
    %p79 = scmp.ne.s32.totalorder %s67, %s68
    %p80 = scmp.eq.s32.totalorder %s16, 1
    %p81 = por %p79, %p80
    %p83 = scmp.ne.s32.totalorder %s68, %s82
    %p84 = scmp.eq.s32.totalorder %s16, 0
    %p85 = por %p83, %p84
    %s87 = sadd.s32 %s86, 1
    %p90 = scmp.eq.s32.totalorder %s10, 1
    %p91 = scmp.ne.s32.totalorder %s86, %s88
    %p92 = scmp.eq.s32.totalorder %s10, 0
    %p93 = por %p91, %p92
    %p94 = scmp.ne.s32.totalorder %s86, %s88
    %p95 = scmp.eq.s32.totalorder %s15, 1
    %p96 = por %p94, %p95
    %p97 = scmp.ne.s32.totalorder %s88, %s89
    %p98 = scmp.eq.s32.totalorder %s15, 0
    %p99 = por %p97, %p98
    %p100 = scmp.ne.s32.totalorder %s88, %s89
    %p101 = scmp.eq.s32.totalorder %s16, 1
    %p102 = por %p100, %p101
    %p104 = scmp.ne.s32.totalorder %s89, %s103
    %p105 = scmp.eq.s32.totalorder %s16, 0
    %p106 = por %p104, %p105
    %s107 = ssub.s32 %s10, %s17
    %p108 = scmp.eq.s32.totalorder %s107, 0
    %s110 = sadd.s32 %s109, 1
    %s111 = scalar_select %p108, %s109, %s110
    %p114 = pneg %p108
    %p115 = scmp.eq.s32.totalorder %s10, 1
    %p116 = por %p114, %p115
    %p117 = scmp.ne.s32.totalorder %s109, %s112
    %p118 = scmp.eq.s32.totalorder %s10, 0
    %p119 = por %p117, %p118
    %p120 = scmp.ne.s32.totalorder %s109, %s112
    %p121 = scmp.eq.s32.totalorder %s15, 1
    %p122 = por %p120, %p121
    %p123 = scmp.ne.s32.totalorder %s112, %s113
    %p124 = scmp.eq.s32.totalorder %s15, 0
    %p125 = por %p123, %p124
    %p126 = scmp.ne.s32.totalorder %s112, %s113
    %p127 = scmp.eq.s32.totalorder %s16, 1
    %p128 = por %p126, %p127
    %p130 = scmp.ne.s32.totalorder %s113, %s129
    %p131 = scmp.eq.s32.totalorder %s16, 0
    %p132 = por %p130, %p131
    %p133 = scmp.le.s32.totalorder 1, %s10
    %p134 = scmp.lt.s32.totalorder %s10, 3
    %p135 = pnand %p133, %p134
    %p136 = pneg %p135
    // Predicated region
    $region9: #{simple1dcnn_forward.2} parent=5 // pred_check
      _
    $region10: #{simple1dcnn_forward.2} parent=5 // pred_check_branch
      %138 = sbr.rel (%p135) target = $region12
    $region11: #{simple1dcnn_forward.2} parent=5 // pred_region
      %s139 = ssub.s32 %s10, 1
      // Predicated region
      $region13: #{simple1dcnn_forward.2} parent=11 // pred_check
        %p140 = pneg %p57
      $region14: #{simple1dcnn_forward.2} parent=11 // pred_check_branch
        %142 = sbr.rel (%p140) target = $region16
      $region15: #{simple1dcnn_forward.2} parent=11 // pred_region
        _
      $region16: #{simple1dcnn_forward.2} parent=11 // pred_fallthru
        _
      // Predicated region
      $region17: #{simple1dcnn_forward.2} parent=11 // pred_check
        %p143 = pneg %p78
      $region18: #{simple1dcnn_forward.2} parent=11 // pred_check_branch
        %145 = sbr.rel (%p143) target = $region20
      $region19: #{simple1dcnn_forward.2} parent=11 // pred_region
        _
      $region20: #{simple1dcnn_forward.2} parent=11 // pred_fallthru
        _
      // Predicated region
      $region21: #{simple1dcnn_forward.2} parent=11 // pred_check
        %p146 = pneg %p99
      $region22: #{simple1dcnn_forward.2} parent=11 // pred_check_branch
        %148 = sbr.rel (%p146) target = $region24
      $region23: #{simple1dcnn_forward.2} parent=11 // pred_region
        _
      $region24: #{simple1dcnn_forward.2} parent=11 // pred_fallthru
        _
    $region12: #{simple1dcnn_forward.2} parent=5 // pred_fallthru
      _
    %p149 = scmp.lt.s32.totalorder %s10, 2
    // Predicated region
    $region25: #{simple1dcnn_forward.2} parent=5 // pred_check
      %p150 = pneg %p149
    $region26: #{simple1dcnn_forward.2} parent=5 // pred_check_branch
      %152 = sbr.rel (%p150) target = $region28
    $region27: #{simple1dcnn_forward.2} parent=5 // pred_region
      // Predicated region
      $region29: #{simple1dcnn_forward.2} parent=27 // pred_check
        %p153 = pneg %p30
      $region30: #{simple1dcnn_forward.2} parent=27 // pred_check_branch
        %155 = sbr.rel (%p153) target = $region32
      $region31: #{simple1dcnn_forward.2} parent=27 // pred_region
        %p156 = scmp.lt.s32.totalorder %s10, 1
        %s157 = scalar_select %p156, %s10, 1
        %s158 = smul.addr %s157, 2
        %s159 = scalar_lea.vmem %s0, %s158
      $region32: #{simple1dcnn_forward.2} parent=27 // pred_fallthru
        _
    $region28: #{simple1dcnn_forward.2} parent=5 // pred_fallthru
      _
    %p160 = scmp.le.s32.totalorder 1, %s10
    %p161 = scmp.lt.s32.totalorder %s10, 3
    %p162 = pnand %p160, %p161
    %p163 = pneg %p162
    // Predicated region
    $region33: #{simple1dcnn_forward.2} parent=5 // pred_check
      _
    $region34: #{simple1dcnn_forward.2} parent=5 // pred_check_branch
      %165 = sbr.rel (%p162) target = $region36
    $region35: #{simple1dcnn_forward.2} parent=5 // pred_region
      %s166 = ssub.s32 %s10, 1
      %p167 = scmp.lt.s32.totalorder %s15, 1
      %s168 = scalar_select %p167, %s15, 1
      %s169 = smul.addr %s168, 2
      %s170 = scalar_lea.vmem %s0, %s169
      %p171 = pneg %p36
      %p172 = pneg %p33
      %p173 = pneg %p57
      %p174 = pneg %p54
      %p175 = pneg %p78
      %p176 = pneg %p75
      %p177 = pneg %p99
      %p178 = pneg %p96
      %p179 = pneg %p125
      %p180 = pneg %p122
      %p181 = scmp.lt.s32.totalorder %s15, 1
      %s182 = scalar_select %p181, %s15, 1
      %s183 = smul.addr %s182, 4
      %s184 = smul.addr %s183, 4
      %s185 = scalar_lea.vmem %s4, %s184
      %p186 = scmp.lt.s32.totalorder %s15, 1
      %s187 = scalar_select %p186, %s15, 1
      %s188 = smul.addr %s187, 2
      %s189 = scalar_lea.vmem %s0, %s188
      %p190 = scmp.lt.s32.totalorder %s15, 1
      %s191 = scalar_select %p190, %s15, 1
      %s192 = smul.addr %s191, 4
      %s193 = smul.addr %s192, 4
      %s194 = scalar_lea.vmem %s4, %s193
      %v196 = vlaneseq
      %v197 = vand.u32 %v196, 127
      %vm198 = vcmp.ge.s32.totalorder %v197, 1
      %v199 = vsel %vm198, 1, 0
      %v200 = vcvt.s32.f32 %v199
      %vm201 = vcmp.lt.s32.totalorder %v197, 127
      %v202 = vsel %vm201, 1, 0
      %v203 = vcvt.s32.f32 %v202
      %v204 = vld [vmem:[%s1] sm:$0xf]
      %v205 = vld [vmem:[%s1 + $0x4] sm:$0xf]
      %v206 = vld [vmem:[%s1 + $0x8] sm:$0xf]
      %v207 = vld [vmem:[%s1 + $0xc] sm:$0xf]
      %v208 = vld [vmem:[%s1 + $0x10] sm:$0xf]
      %v209 = vld [vmem:[%s1 + $0x14] sm:$0xf]
      %v210 = vld [vmem:[%s1 + $0x18] sm:$0xf]
      %v211 = vld [vmem:[%s1 + $0x1c] sm:$0xf]
      %v212 = vld [vmem:[%s2] sm:$0xf]
      %v213 = vld [vmem:[%s2 + $0x4] sm:$0xf]
      %v214 = vld [vmem:[%s2 + $0x8] sm:$0xf]
      %v215 = vld [vmem:[%s2 + $0xc] sm:$0xf]
      %v216 = vld [vmem:[%s2 + $0x10] sm:$0xf]
      %v217 = vld [vmem:[%s2 + $0x14] sm:$0xf]
      %v218 = vld [vmem:[%s2 + $0x18] sm:$0xf]
      %v219 = vld [vmem:[%s2 + $0x1c] sm:$0xf]
      %v220 = vld [vmem:[%s3] sm:$0xff]
      %v221 = vld [vmem:[%s3 + $0x8] sm:$0xff]
      %v222 = vld [vmem:[%s3 + $0x10] sm:$0xff]
      %v223 = vld [vmem:[%s3 + $0x18] sm:$0xff]
      %v224 = vld [vmem:[%s189] sm:$0x3]
      %v225 = vunpack.c.l.bf16 %v224
      %vm226 = vcmask 1043456
      %v227 = vsel %vm226, %v225, 1.0
      %228 = vrot.lane.b32.xlu0 %v227, 1
      %v229 = vpop.permute.xlu0 %228
      %v230 = vmul.f32 %v229, %v200
      %231 = vrot.lane.b32.xlu0 %v227, 127
      %v232 = vpop.permute.xlu0 %231
      %v233 = vmul.f32 %v232, %v203
      %v234 = vpack.c.bf16 %v227, %v230
      %v235 = vpack.c.bf16 %v233, %v233
      %v244 = vunpack.c.l.b16 %v204
      %v245 = vunpack.c.l.b16 %v205
      %v246 = vunpack.c.l.b16 %v206
      %v247 = vunpack.c.l.b16 %v207
      %v248 = vunpack.c.l.b16 %v208
      %v249 = vunpack.c.l.b16 %v209
      %v250 = vunpack.c.l.b16 %v210
      %v251 = vunpack.c.l.b16 %v211
      %v252 = vpack.c.b16 %v245, %v244
      %v253 = vpack.c.b16 %v247, %v246
      %v254 = vpack.c.b16 %v249, %v248
      %v255 = vpack.c.b16 %v251, %v250
      %vm256 = vcmask 195584
      %v258 = vsel %vm256, %v252, 0
      %v261 = vsel %vm256, %v253, 0
      %v264 = vsel %vm256, %v254, 0
      %v267 = vsel %vm256, %v255, 0
      %v270 = vsel %vm226, %v235, 0
      %272 = vmatpush.bf16.msra.mxu0 0
      %273 = vmatpush.bf16.msra.mxu0 0
      %274 = vmatpush.bf16.msra.mxu0 0
      %275 = vmatpush.bf16.msra.mxu0 0
      %276 = vmatpush.bf16.msra.mxu0 0
      %277 = vmatpush.bf16.msra.mxu0 0
      %278 = vmatpush.bf16.msra.mxu0 %v270
      %279 = vmatpush.bf16.msra.mxu0 %v234
      %280 = vmatmul.bf16.gmra.mxu0 %v258
      %v281 = vpop.f32.mrf.mxu0
      %v282 = vadd.f32 0.0, %v281
      %v283 = vpop.f32.mrf.mxu0
      %v284 = vadd.f32 0.0, %v283
      %285 = vmatmul.bf16.gmra.mxu0 %v261
      %v286 = vpop.f32.mrf.mxu0
      %v287 = vadd.f32 0.0, %v286
      %v288 = vpop.f32.mrf.mxu0
      %v289 = vadd.f32 0.0, %v288
      %290 = vmatmul.bf16.gmra.mxu0 %v264
      %v291 = vpop.f32.mrf.mxu0
      %v292 = vadd.f32 0.0, %v291
      %v293 = vpop.f32.mrf.mxu0
      %v294 = vadd.f32 0.0, %v293
      %295 = vmatmul.bf16.gmra.mxu0 %v267
      %v296 = vpop.f32.mrf.mxu0
      %v297 = vadd.f32 0.0, %v296
      %v298 = vpop.f32.mrf.mxu0
      %v299 = vadd.f32 0.0, %v298
      %300 = vdwg.mxu0
      %v301 = vmax.f32 %v282, %v292
      %v302 = vmax.f32 %v284, %v294
      %v303 = vmax.f32 %v287, %v297
      %v304 = vmax.f32 %v289, %v299
      %v305 = vmax.f32 %v301, 0.0
      %v306 = vmax.f32 %v302, 0.0
      %v307 = vmax.f32 %v303, 0.0
      %v308 = vmax.f32 %v304, 0.0
      %309 = vrot.lane.b32.xlu0 %v305, 1
      %v310 = vpop.permute.xlu0 %309
      %311 = vrot.lane.b32.xlu0 %v306, 1
      %v312 = vpop.permute.xlu0 %311
      %313 = vrot.lane.b32.xlu0 %v307, 1
      %v314 = vpop.permute.xlu0 %313
      %315 = vrot.lane.b32.xlu0 %v308, 1
      %v316 = vpop.permute.xlu0 %315
      %v317 = vmul.f32 %v310, %v200
      %v318 = vmul.f32 %v312, %v200
      %v319 = vmul.f32 %v314, %v200
      %v320 = vmul.f32 %v316, %v200
      %321 = vrot.lane.b32.xlu0 %v305, 127
      %v322 = vpop.permute.xlu0 %321
      %323 = vrot.lane.b32.xlu0 %v306, 127
      %v324 = vpop.permute.xlu0 %323
      %325 = vrot.lane.b32.xlu0 %v307, 127
      %v326 = vpop.permute.xlu0 %325
      %327 = vrot.lane.b32.xlu0 %v308, 127
      %v328 = vpop.permute.xlu0 %327
      %v329 = vmul.f32 %v322, %v203
      %v330 = vmul.f32 %v324, %v203
      %v331 = vmul.f32 %v326, %v203
      %v332 = vmul.f32 %v328, %v203
      %v333 = vpack.c.bf16 %v318, %v317
      %v334 = vpack.c.bf16 %v320, %v319
      %v335 = vpack.c.bf16 %v306, %v305
      %v336 = vpack.c.bf16 %v308, %v307
      %v337 = vpack.c.bf16 %v330, %v329
      %v338 = vpack.c.bf16 %v332, %v331
      %v347 = vunpack.c.l.b16 %v212
      %v348 = vunpack.c.l.b16 %v213
      %v349 = vunpack.c.l.b16 %v214
      %v350 = vunpack.c.l.b16 %v215
      %v351 = vunpack.c.l.b16 %v216
      %v352 = vunpack.c.l.b16 %v217
      %v353 = vunpack.c.l.b16 %v218
      %v354 = vunpack.c.l.b16 %v219
      %v355 = vpack.c.b16 %v348, %v347
      %v356 = vpack.c.b16 %v350, %v349
      %v357 = vpack.c.b16 %v352, %v351
      %v358 = vpack.c.b16 %v354, %v353
      %vm359 = vcmask 785408
      %v361 = vsel %vm359, %v355, 0
      %v364 = vsel %vm359, %v356, 0
      %v367 = vsel %vm359, %v357, 0
      %v370 = vsel %vm359, %v358, 0
      %372 = vmatpush.bf16.msra.mxu0 0
      %373 = vmatpush.bf16.msra.mxu0 0
      %374 = vmatpush.bf16.msra.mxu0 %v338
      %375 = vmatpush.bf16.msra.mxu0 %v337
      %376 = vmatpush.bf16.msra.mxu0 %v336
      %377 = vmatpush.bf16.msra.mxu0 %v335
      %378 = vmatpush.bf16.msra.mxu0 %v334
      %379 = vmatpush.bf16.msra.mxu0 %v333
      %380 = vmatmul.bf16.gmra.mxu0 %v361
      %v381 = vpop.f32.mrf.mxu0
      %v382 = vadd.f32 0.0, %v381
      %v383 = vpop.f32.mrf.mxu0
      %v384 = vadd.f32 0.0, %v383
      %385 = vmatmul.bf16.gmra.mxu0 %v364
      %v386 = vpop.f32.mrf.mxu0
      %v387 = vadd.f32 0.0, %v386
      %v388 = vpop.f32.mrf.mxu0
      %v389 = vadd.f32 0.0, %v388
      %390 = vmatmul.bf16.gmra.mxu0 %v367
      %v391 = vpop.f32.mrf.mxu0
      %v392 = vadd.f32 0.0, %v391
      %v393 = vpop.f32.mrf.mxu0
      %v394 = vadd.f32 0.0, %v393
      %395 = vmatmul.bf16.gmra.mxu0 %v370
      %v396 = vpop.f32.mrf.mxu0
      %v397 = vadd.f32 0.0, %v396
      %v398 = vpop.f32.mrf.mxu0
      %v399 = vadd.f32 0.0, %v398
      %400 = vdwg.mxu0
      %v401 = vmax.f32 %v382, %v392
      %v402 = vmax.f32 %v384, %v394
      %v403 = vmax.f32 %v387, %v397
      %v404 = vmax.f32 %v389, %v399
      %406 = vset.pattern.permute.xlu0 0
      %407 = vperm.xlu0 %406, %v220
      %v408 = vpop.permute.xlu0 %407
      %411 = vset.pattern.permute.xlu0 0
      %412 = vperm.xlu0 %411, %v221
      %v413 = vpop.permute.xlu0 %412
      %416 = vset.pattern.permute.xlu0 0
      %417 = vperm.xlu0 %416, %v222
      %v418 = vpop.permute.xlu0 %417
      %421 = vset.pattern.permute.xlu0 0
      %422 = vperm.xlu0 %421, %v223
      %v423 = vpop.permute.xlu0 %422
      %v425 = vadd.f32 %v401, %v408
      %v426 = vadd.f32 %v402, %v413
      %v427 = vadd.f32 %v403, %v418
      %v428 = vadd.f32 %v404, %v423
      %v429 = vmax.f32 %v425, 0.0
      %v430 = vmax.f32 %v426, 0.0
      %v431 = vmax.f32 %v427, 0.0
      %v432 = vmax.f32 %v428, 0.0
      %v433 = vpack.c.bf16 %v429, %v429
      %v434 = vpack.c.bf16 %v430, %v430
      %v435 = vpack.c.bf16 %v431, %v431
      %v436 = vpack.c.bf16 %v432, %v432
      %437 = vst [vmem:[%s194] sm:$0xf] %v433
      %438 = vst [vmem:[%s194 + $0x4] sm:$0xf] %v434
      %439 = vst [vmem:[%s194 + $0x8] sm:$0xf] %v435
      %440 = vst [vmem:[%s194 + $0xc] sm:$0xf] %v436
      %p441 = scmp.lt.s32.totalorder %s15, 1
      %s442 = scalar_select %p441, %s15, 1
      %s443 = smul.addr %s442, 4
      %s444 = smul.addr %s443, 4
      %s445 = scalar_lea.vmem %s4, %s444
      // Predicated region
      $region37: #{simple1dcnn_forward.2} parent=35 // pred_check
        %p446 = pneg %p122
      $region38: #{simple1dcnn_forward.2} parent=35 // pred_check_branch
        %448 = sbr.rel (%p446) target = $region40
      $region39: #{simple1dcnn_forward.2} parent=35 // pred_region
        _
      $region40: #{simple1dcnn_forward.2} parent=35 // pred_fallthru
        _
    $region36: #{simple1dcnn_forward.2} parent=5 // pred_fallthru
      _
    %p449 = scmp.le.s32.totalorder 2, %s10
    // Predicated region
    $region41: #{simple1dcnn_forward.2} parent=5 // pred_check
      %p450 = pneg %p449
    $region42: #{simple1dcnn_forward.2} parent=5 // pred_check_branch
      %452 = sbr.rel (%p450) target = $region44
    $region43: #{simple1dcnn_forward.2} parent=5 // pred_region
      %s453 = ssub.s32 %s10, 2
      // Predicated region
      $region45: #{simple1dcnn_forward.2} parent=43 // pred_check
        %p454 = pneg %p128
      $region46: #{simple1dcnn_forward.2} parent=43 // pred_check_branch
        %456 = sbr.rel (%p454) target = $region48
      $region47: #{simple1dcnn_forward.2} parent=43 // pred_region
        %p457 = scmp.lt.s32.totalorder %s16, 1
        %s458 = scalar_select %p457, %s16, 1
        %s459 = smul.addr %s458, 4
        %s460 = smul.addr %s459, 4
        %s461 = scalar_lea.vmem %s4, %s460
      $region48: #{simple1dcnn_forward.2} parent=43 // pred_fallthru
        _
    $region44: #{simple1dcnn_forward.2} parent=5 // pred_fallthru
      _
  $region6: #{simple1dcnn_forward.2} parent=0 // loop_footer
    %s14 = sadd.s32 1, %s10
  $region7: #{simple1dcnn_forward.2} parent=0 // loop_footer_branch
    %9 = sbr.rel target = $region3
  $region8: #{simple1dcnn_forward.2} parent=0 // loop_exit
    _

// kernel: simple1dcnn_forward.3
$region0: #{simple1dcnn_forward.3}
  #allocation0 [shape = 'u32[]', space=smem, size = 0x4, offset = 0x4, fixed_abs, tag = 'smem constant byte address 0x4 - core index']
  #allocation1 [shape = 'u32[72,128]{1,0:T(1,128)}', space=vmem, size = 0x9000, scoped, tag = 'internal scratch']
  #allocation2 [shape = 'f32[2,64]{1,0:T(2,128)}', space=vmem, size = 0x400, scoped, tag = 'scratch operand']
  %s0 = inlined_call_operand.vmem [shape: bf16[2,4096], index: 0, kind: input, shape index: {}]
  %s1 = inlined_call_operand.vmem [shape: bf16[4096,64], index: 1, kind: input, shape index: {}]
  %s2 = inlined_call_operand.vmem [shape: f32[1,64], index: 2, kind: input, shape index: {}]
  %s3 = inlined_call_operand.hbm [shape: f32[2,64], index: 3, kind: output, shape index: {}]
  %s4 = sld [smem:[#allocation0]]
  $region30: #{simple1dcnn_forward.3} parent=0
    _
  %s6 = ssub.s32 1, %s4
  %s7 = scalar_select 0, %s6, %s4
  $region1: #{simple1dcnn_forward.3} parent=0
    #allocation3 [shape = 'u8[1024]{0}', space=vmem, size = 0x400, scoped, tag = 'output window, operand 0, single buffered']
    #allocation4 [shape = 's32[1]{0}', space=sflag, size = 0x4, scoped, tag = 'scoped memory for simple1dcnn_forward.3']
    %8 = vsyncpa [#allocation4], 0
    // Predicated region
    $region2: #{simple1dcnn_forward.3} parent=1 // pred_check
      _
    $region3: #{simple1dcnn_forward.3} parent=1 // pred_check_branch
      %10 = sbr.rel (0) target = $region5
    $region4: #{simple1dcnn_forward.3} parent=1 // pred_region
      _
    $region5: #{simple1dcnn_forward.3} parent=1 // pred_fallthru
      _
    // Predicated region
    $region6: #{simple1dcnn_forward.3} parent=1 // pred_check
      _
    $region7: #{simple1dcnn_forward.3} parent=1 // pred_check_branch
      %12 = sbr.rel (0) target = $region9
    $region8: #{simple1dcnn_forward.3} parent=1 // pred_region
      _
    $region9: #{simple1dcnn_forward.3} parent=1 // pred_fallthru
      _
    // Predicated region
    $region10: #{simple1dcnn_forward.3} parent=1 // pred_check
      _
    $region11: #{simple1dcnn_forward.3} parent=1 // pred_check_branch
      %14 = sbr.rel (0) target = $region13
    $region12: #{simple1dcnn_forward.3} parent=1 // pred_region
      _
    $region13: #{simple1dcnn_forward.3} parent=1 // pred_fallthru
      _
    %p15 = scmp.eq.s32.totalorder 0, 0
    // Predicated region
    $region14: #{simple1dcnn_forward.3} parent=1 // pred_check
      %p16 = pneg %p15
    $region15: #{simple1dcnn_forward.3} parent=1 // pred_check_branch
      %18 = sbr.rel (%p16) target = $region17
    $region16: #{simple1dcnn_forward.3} parent=1 // pred_region
      %vm19 = vcmask 517120
      %20 = vst.msk [vmem:[#allocation2] sm:$0x3] %vm19, 0.0
    $region17: #{simple1dcnn_forward.3} parent=1 // pred_fallthru
      _
    %v21 = vld [vmem:[#allocation2] sm:$0x3]
    %v22 = vld [vmem:[%s0] sm:$0xff]
    %v23 = vld [vmem:[%s0 + $0x8] sm:$0xff]
    %v24 = vld [vmem:[%s0 + $0x10] sm:$0xff]
    %v25 = vld [vmem:[%s0 + $0x18] sm:$0xff]
    %v26 = vld [vmem:[%s1] sm:$0xf]
    %v27 = vld [vmem:[%s1 + $0x4] sm:$0xf]
    %v28 = vld [vmem:[%s1 + $0x8] sm:$0xf]
    %v29 = vld [vmem:[%s1 + $0xc] sm:$0xf]
    %v30 = vld [vmem:[%s1 + $0x10] sm:$0xf]
    %v31 = vld [vmem:[%s1 + $0x14] sm:$0xf]
    %v32 = vld [vmem:[%s1 + $0x18] sm:$0xf]
    %v33 = vld [vmem:[%s1 + $0x1c] sm:$0xf]
    %v34 = vld [vmem:[%s1 + $0x20] sm:$0xf]
    %v35 = vld [vmem:[%s1 + $0x24] sm:$0xf]
    %v36 = vld [vmem:[%s1 + $0x28] sm:$0xf]
    %v37 = vld [vmem:[%s1 + $0x2c] sm:$0xf]
    %v38 = vld [vmem:[%s1 + $0x30] sm:$0xf]
    %v39 = vld [vmem:[%s1 + $0x34] sm:$0xf]
    %v40 = vld [vmem:[%s1 + $0x38] sm:$0xf]
    %v41 = vld [vmem:[%s1 + $0x3c] sm:$0xf]
    %v42 = vld [vmem:[%s1 + $0x40] sm:$0xf]
    %v43 = vld [vmem:[%s1 + $0x44] sm:$0xf]
    %v44 = vld [vmem:[%s1 + $0x48] sm:$0xf]
    %v45 = vld [vmem:[%s1 + $0x4c] sm:$0xf]
    %v46 = vld [vmem:[%s1 + $0x50] sm:$0xf]
    %v47 = vld [vmem:[%s1 + $0x54] sm:$0xf]
    %v48 = vld [vmem:[%s1 + $0x58] sm:$0xf]
    %v49 = vld [vmem:[%s1 + $0x5c] sm:$0xf]
    %v50 = vld [vmem:[%s1 + $0x60] sm:$0xf]
    %v51 = vld [vmem:[%s1 + $0x64] sm:$0xf]
    %v52 = vld [vmem:[%s1 + $0x68] sm:$0xf]
    %v53 = vld [vmem:[%s1 + $0x6c] sm:$0xf]
    %v54 = vld [vmem:[%s1 + $0x70] sm:$0xf]
    %v55 = vld [vmem:[%s1 + $0x74] sm:$0xf]
    %v56 = vld [vmem:[%s1 + $0x78] sm:$0xf]
    %v57 = vld [vmem:[%s1 + $0x7c] sm:$0xf]
    %v58 = vld [vmem:[%s1 + $0x80] sm:$0xf]
    %v59 = vld [vmem:[%s1 + $0x84] sm:$0xf]
    %v60 = vld [vmem:[%s1 + $0x88] sm:$0xf]
    %v61 = vld [vmem:[%s1 + $0x8c] sm:$0xf]
    %v62 = vld [vmem:[%s1 + $0x90] sm:$0xf]
    %v63 = vld [vmem:[%s1 + $0x94] sm:$0xf]
    %v64 = vld [vmem:[%s1 + $0x98] sm:$0xf]
    %v65 = vld [vmem:[%s1 + $0x9c] sm:$0xf]
    %v66 = vld [vmem:[%s1 + $0xa0] sm:$0xf]
    %v67 = vld [vmem:[%s1 + $0xa4] sm:$0xf]
    %v68 = vld [vmem:[%s1 + $0xa8] sm:$0xf]
    %v69 = vld [vmem:[%s1 + $0xac] sm:$0xf]
    %v70 = vld [vmem:[%s1 + $0xb0] sm:$0xf]
    %v71 = vld [vmem:[%s1 + $0xb4] sm:$0xf]
    %v72 = vld [vmem:[%s1 + $0xb8] sm:$0xf]
    %v73 = vld [vmem:[%s1 + $0xbc] sm:$0xf]
    %v74 = vld [vmem:[%s1 + $0xc0] sm:$0xf]
    %v75 = vld [vmem:[%s1 + $0xc4] sm:$0xf]
    %v76 = vld [vmem:[%s1 + $0xc8] sm:$0xf]
    %v77 = vld [vmem:[%s1 + $0xcc] sm:$0xf]
    %v78 = vld [vmem:[%s1 + $0xd0] sm:$0xf]
    %v79 = vld [vmem:[%s1 + $0xd4] sm:$0xf]
    %v80 = vld [vmem:[%s1 + $0xd8] sm:$0xf]
    %v81 = vld [vmem:[%s1 + $0xdc] sm:$0xf]
    %v82 = vld [vmem:[%s1 + $0xe0] sm:$0xf]
    %v83 = vld [vmem:[%s1 + $0xe4] sm:$0xf]
    %v84 = vld [vmem:[%s1 + $0xe8] sm:$0xf]
    %v85 = vld [vmem:[%s1 + $0xec] sm:$0xf]
    %v86 = vld [vmem:[%s1 + $0xf0] sm:$0xf]
    %v87 = vld [vmem:[%s1 + $0xf4] sm:$0xf]
    %v88 = vld [vmem:[%s1 + $0xf8] sm:$0xf]
    %v89 = vld [vmem:[%s1 + $0xfc] sm:$0xf]
    %v90 = vld [vmem:[%s1 + $0x100] sm:$0xf]
    %v91 = vld [vmem:[%s1 + $0x104] sm:$0xf]
    %v92 = vld [vmem:[%s1 + $0x108] sm:$0xf]
    %v93 = vld [vmem:[%s1 + $0x10c] sm:$0xf]
    %v94 = vld [vmem:[%s1 + $0x110] sm:$0xf]
    %v95 = vld [vmem:[%s1 + $0x114] sm:$0xf]
    %v96 = vld [vmem:[%s1 + $0x118] sm:$0xf]
    %v97 = vld [vmem:[%s1 + $0x11c] sm:$0xf]
    %v98 = vld [vmem:[%s1 + $0x120] sm:$0xf]
    %v99 = vld [vmem:[%s1 + $0x124] sm:$0xf]
    %v100 = vld [vmem:[%s1 + $0x128] sm:$0xf]
    %v101 = vld [vmem:[%s1 + $0x12c] sm:$0xf]
    %v102 = vld [vmem:[%s1 + $0x130] sm:$0xf]
    %v103 = vld [vmem:[%s1 + $0x134] sm:$0xf]
    %v104 = vld [vmem:[%s1 + $0x138] sm:$0xf]
    %v105 = vld [vmem:[%s1 + $0x13c] sm:$0xf]
    %v106 = vld [vmem:[%s1 + $0x140] sm:$0xf]
    %v107 = vld [vmem:[%s1 + $0x144] sm:$0xf]
    %v108 = vld [vmem:[%s1 + $0x148] sm:$0xf]
    %v109 = vld [vmem:[%s1 + $0x14c] sm:$0xf]
    %v110 = vld [vmem:[%s1 + $0x150] sm:$0xf]
    %v111 = vld [vmem:[%s1 + $0x154] sm:$0xf]
    %v112 = vld [vmem:[%s1 + $0x158] sm:$0xf]
    %v113 = vld [vmem:[%s1 + $0x15c] sm:$0xf]
    %v114 = vld [vmem:[%s1 + $0x160] sm:$0xf]
    %v115 = vld [vmem:[%s1 + $0x164] sm:$0xf]
    %v116 = vld [vmem:[%s1 + $0x168] sm:$0xf]
    %v117 = vld [vmem:[%s1 + $0x16c] sm:$0xf]
    %v118 = vld [vmem:[%s1 + $0x170] sm:$0xf]
    %v119 = vld [vmem:[%s1 + $0x174] sm:$0xf]
    %v120 = vld [vmem:[%s1 + $0x178] sm:$0xf]
    %v121 = vld [vmem:[%s1 + $0x17c] sm:$0xf]
    %v122 = vld [vmem:[%s1 + $0x180] sm:$0xf]
    %v123 = vld [vmem:[%s1 + $0x184] sm:$0xf]
    %v124 = vld [vmem:[%s1 + $0x188] sm:$0xf]
    %v125 = vld [vmem:[%s1 + $0x18c] sm:$0xf]
    %v126 = vld [vmem:[%s1 + $0x190] sm:$0xf]
    %v127 = vld [vmem:[%s1 + $0x194] sm:$0xf]
    %v128 = vld [vmem:[%s1 + $0x198] sm:$0xf]
    %v129 = vld [vmem:[%s1 + $0x19c] sm:$0xf]
    %v130 = vld [vmem:[%s1 + $0x1a0] sm:$0xf]
    %v131 = vld [vmem:[%s1 + $0x1a4] sm:$0xf]
    %v132 = vld [vmem:[%s1 + $0x1a8] sm:$0xf]
    %v133 = vld [vmem:[%s1 + $0x1ac] sm:$0xf]
    %v134 = vld [vmem:[%s1 + $0x1b0] sm:$0xf]
    %v135 = vld [vmem:[%s1 + $0x1b4] sm:$0xf]
    %v136 = vld [vmem:[%s1 + $0x1b8] sm:$0xf]
    %v137 = vld [vmem:[%s1 + $0x1bc] sm:$0xf]
    %v138 = vld [vmem:[%s1 + $0x1c0] sm:$0xf]
    %v139 = vld [vmem:[%s1 + $0x1c4] sm:$0xf]
    %v140 = vld [vmem:[%s1 + $0x1c8] sm:$0xf]
    %v141 = vld [vmem:[%s1 + $0x1cc] sm:$0xf]
    %v142 = vld [vmem:[%s1 + $0x1d0] sm:$0xf]
    %v143 = vld [vmem:[%s1 + $0x1d4] sm:$0xf]
    %v144 = vld [vmem:[%s1 + $0x1d8] sm:$0xf]
    %v145 = vld [vmem:[%s1 + $0x1dc] sm:$0xf]
    %v146 = vld [vmem:[%s1 + $0x1e0] sm:$0xf]
    %v147 = vld [vmem:[%s1 + $0x1e4] sm:$0xf]
    %v148 = vld [vmem:[%s1 + $0x1e8] sm:$0xf]
    %v149 = vld [vmem:[%s1 + $0x1ec] sm:$0xf]
    %v150 = vld [vmem:[%s1 + $0x1f0] sm:$0xf]
    %v151 = vld [vmem:[%s1 + $0x1f4] sm:$0xf]
    %v152 = vld [vmem:[%s1 + $0x1f8] sm:$0xf]
    %v153 = vld [vmem:[%s1 + $0x1fc] sm:$0xf]
    %v154 = vld [vmem:[%s1 + $0x200] sm:$0xf]
    %v155 = vld [vmem:[%s1 + $0x204] sm:$0xf]
    %v156 = vld [vmem:[%s1 + $0x208] sm:$0xf]
    %v157 = vld [vmem:[%s1 + $0x20c] sm:$0xf]
    %v158 = vld [vmem:[%s1 + $0x210] sm:$0xf]
    %v159 = vld [vmem:[%s1 + $0x214] sm:$0xf]
    %v160 = vld [vmem:[%s1 + $0x218] sm:$0xf]
    %v161 = vld [vmem:[%s1 + $0x21c] sm:$0xf]
    %v162 = vld [vmem:[%s1 + $0x220] sm:$0xf]
    %v163 = vld [vmem:[%s1 + $0x224] sm:$0xf]
    %v164 = vld [vmem:[%s1 + $0x228] sm:$0xf]
    %v165 = vld [vmem:[%s1 + $0x22c] sm:$0xf]
    %v166 = vld [vmem:[%s1 + $0x230] sm:$0xf]
    %v167 = vld [vmem:[%s1 + $0x234] sm:$0xf]
    %v168 = vld [vmem:[%s1 + $0x238] sm:$0xf]
    %v169 = vld [vmem:[%s1 + $0x23c] sm:$0xf]
    %v170 = vld [vmem:[%s1 + $0x240] sm:$0xf]
    %v171 = vld [vmem:[%s1 + $0x244] sm:$0xf]
    %v172 = vld [vmem:[%s1 + $0x248] sm:$0xf]
    %v173 = vld [vmem:[%s1 + $0x24c] sm:$0xf]
    %v174 = vld [vmem:[%s1 + $0x250] sm:$0xf]
    %v175 = vld [vmem:[%s1 + $0x254] sm:$0xf]
    %v176 = vld [vmem:[%s1 + $0x258] sm:$0xf]
    %v177 = vld [vmem:[%s1 + $0x25c] sm:$0xf]
    %v178 = vld [vmem:[%s1 + $0x260] sm:$0xf]
    %v179 = vld [vmem:[%s1 + $0x264] sm:$0xf]
    %v180 = vld [vmem:[%s1 + $0x268] sm:$0xf]
    %v181 = vld [vmem:[%s1 + $0x26c] sm:$0xf]
    %v182 = vld [vmem:[%s1 + $0x270] sm:$0xf]
    %v183 = vld [vmem:[%s1 + $0x274] sm:$0xf]
    %v184 = vld [vmem:[%s1 + $0x278] sm:$0xf]
    %v185 = vld [vmem:[%s1 + $0x27c] sm:$0xf]
    %v186 = vld [vmem:[%s1 + $0x280] sm:$0xf]
    %v187 = vld [vmem:[%s1 + $0x284] sm:$0xf]
    %v188 = vld [vmem:[%s1 + $0x288] sm:$0xf]
    %v189 = vld [vmem:[%s1 + $0x28c] sm:$0xf]
    %v190 = vld [vmem:[%s1 + $0x290] sm:$0xf]
    %v191 = vld [vmem:[%s1 + $0x294] sm:$0xf]
    %v192 = vld [vmem:[%s1 + $0x298] sm:$0xf]
    %v193 = vld [vmem:[%s1 + $0x29c] sm:$0xf]
    %v194 = vld [vmem:[%s1 + $0x2a0] sm:$0xf]
    %v195 = vld [vmem:[%s1 + $0x2a4] sm:$0xf]
    %v196 = vld [vmem:[%s1 + $0x2a8] sm:$0xf]
    %v197 = vld [vmem:[%s1 + $0x2ac] sm:$0xf]
    %v198 = vld [vmem:[%s1 + $0x2b0] sm:$0xf]
    %v199 = vld [vmem:[%s1 + $0x2b4] sm:$0xf]
    %v200 = vld [vmem:[%s1 + $0x2b8] sm:$0xf]
    %v201 = vld [vmem:[%s1 + $0x2bc] sm:$0xf]
    %v202 = vld [vmem:[%s1 + $0x2c0] sm:$0xf]
    %v203 = vld [vmem:[%s1 + $0x2c4] sm:$0xf]
    %v204 = vld [vmem:[%s1 + $0x2c8] sm:$0xf]
    %v205 = vld [vmem:[%s1 + $0x2cc] sm:$0xf]
    %v206 = vld [vmem:[%s1 + $0x2d0] sm:$0xf]
    %v207 = vld [vmem:[%s1 + $0x2d4] sm:$0xf]
    %v208 = vld [vmem:[%s1 + $0x2d8] sm:$0xf]
    %v209 = vld [vmem:[%s1 + $0x2dc] sm:$0xf]
    %v210 = vld [vmem:[%s1 + $0x2e0] sm:$0xf]
    %v211 = vld [vmem:[%s1 + $0x2e4] sm:$0xf]
    %v212 = vld [vmem:[%s1 + $0x2e8] sm:$0xf]
    %v213 = vld [vmem:[%s1 + $0x2ec] sm:$0xf]
    %v214 = vld [vmem:[%s1 + $0x2f0] sm:$0xf]
    %v215 = vld [vmem:[%s1 + $0x2f4] sm:$0xf]
    %v216 = vld [vmem:[%s1 + $0x2f8] sm:$0xf]
    %v217 = vld [vmem:[%s1 + $0x2fc] sm:$0xf]
    %v218 = vld [vmem:[%s1 + $0x300] sm:$0xf]
    %v219 = vld [vmem:[%s1 + $0x304] sm:$0xf]
    %v220 = vld [vmem:[%s1 + $0x308] sm:$0xf]
    %v221 = vld [vmem:[%s1 + $0x30c] sm:$0xf]
    %v222 = vld [vmem:[%s1 + $0x310] sm:$0xf]
    %v223 = vld [vmem:[%s1 + $0x314] sm:$0xf]
    %v224 = vld [vmem:[%s1 + $0x318] sm:$0xf]
    %v225 = vld [vmem:[%s1 + $0x31c] sm:$0xf]
    %v226 = vld [vmem:[%s1 + $0x320] sm:$0xf]
    %v227 = vld [vmem:[%s1 + $0x324] sm:$0xf]
    %v228 = vld [vmem:[%s1 + $0x328] sm:$0xf]
    %v229 = vld [vmem:[%s1 + $0x32c] sm:$0xf]
    %v230 = vld [vmem:[%s1 + $0x330] sm:$0xf]
    %v231 = vld [vmem:[%s1 + $0x334] sm:$0xf]
    %v232 = vld [vmem:[%s1 + $0x338] sm:$0xf]
    %v233 = vld [vmem:[%s1 + $0x33c] sm:$0xf]
    %v234 = vld [vmem:[%s1 + $0x340] sm:$0xf]
    %v235 = vld [vmem:[%s1 + $0x344] sm:$0xf]
    %v236 = vld [vmem:[%s1 + $0x348] sm:$0xf]
    %v237 = vld [vmem:[%s1 + $0x34c] sm:$0xf]
    %v238 = vld [vmem:[%s1 + $0x350] sm:$0xf]
    %v239 = vld [vmem:[%s1 + $0x354] sm:$0xf]
    %v240 = vld [vmem:[%s1 + $0x358] sm:$0xf]
    %v241 = vld [vmem:[%s1 + $0x35c] sm:$0xf]
    %v242 = vld [vmem:[%s1 + $0x360] sm:$0xf]
    %v243 = vld [vmem:[%s1 + $0x364] sm:$0xf]
    %v244 = vld [vmem:[%s1 + $0x368] sm:$0xf]
    %v245 = vld [vmem:[%s1 + $0x36c] sm:$0xf]
    %v246 = vld [vmem:[%s1 + $0x370] sm:$0xf]
    %v247 = vld [vmem:[%s1 + $0x374] sm:$0xf]
    %v248 = vld [vmem:[%s1 + $0x378] sm:$0xf]
    %v249 = vld [vmem:[%s1 + $0x37c] sm:$0xf]
    %v250 = vld [vmem:[%s1 + $0x380] sm:$0xf]
    %v251 = vld [vmem:[%s1 + $0x384] sm:$0xf]
    %v252 = vld [vmem:[%s1 + $0x388] sm:$0xf]
    %v253 = vld [vmem:[%s1 + $0x38c] sm:$0xf]
    %v254 = vld [vmem:[%s1 + $0x390] sm:$0xf]
    %v255 = vld [vmem:[%s1 + $0x394] sm:$0xf]
    %v256 = vld [vmem:[%s1 + $0x398] sm:$0xf]
    %v257 = vld [vmem:[%s1 + $0x39c] sm:$0xf]
    %v258 = vld [vmem:[%s1 + $0x3a0] sm:$0xf]
    %v259 = vld [vmem:[%s1 + $0x3a4] sm:$0xf]
    %v260 = vld [vmem:[%s1 + $0x3a8] sm:$0xf]
    %v261 = vld [vmem:[%s1 + $0x3ac] sm:$0xf]
    %v262 = vld [vmem:[%s1 + $0x3b0] sm:$0xf]
    %v263 = vld [vmem:[%s1 + $0x3b4] sm:$0xf]
    %v264 = vld [vmem:[%s1 + $0x3b8] sm:$0xf]
    %v265 = vld [vmem:[%s1 + $0x3bc] sm:$0xf]
    %v266 = vld [vmem:[%s1 + $0x3c0] sm:$0xf]
    %v267 = vld [vmem:[%s1 + $0x3c4] sm:$0xf]
    %v268 = vld [vmem:[%s1 + $0x3c8] sm:$0xf]
    %v269 = vld [vmem:[%s1 + $0x3cc] sm:$0xf]
    %v270 = vld [vmem:[%s1 + $0x3d0] sm:$0xf]
    %v271 = vld [vmem:[%s1 + $0x3d4] sm:$0xf]
    %v272 = vld [vmem:[%s1 + $0x3d8] sm:$0xf]
    %v273 = vld [vmem:[%s1 + $0x3dc] sm:$0xf]
    %v274 = vld [vmem:[%s1 + $0x3e0] sm:$0xf]
    %v275 = vld [vmem:[%s1 + $0x3e4] sm:$0xf]
    %v276 = vld [vmem:[%s1 + $0x3e8] sm:$0xf]
    %v277 = vld [vmem:[%s1 + $0x3ec] sm:$0xf]
    %v278 = vld [vmem:[%s1 + $0x3f0] sm:$0xf]
    %v279 = vld [vmem:[%s1 + $0x3f4] sm:$0xf]
    %v280 = vld [vmem:[%s1 + $0x3f8] sm:$0xf]
    %v281 = vld [vmem:[%s1 + $0x3fc] sm:$0xf]
    %v282 = vld [vmem:[%s1 + $0x400] sm:$0xf]
    %v283 = vld [vmem:[%s1 + $0x404] sm:$0xf]
    %v284 = vld [vmem:[%s1 + $0x408] sm:$0xf]
    %v285 = vld [vmem:[%s1 + $0x40c] sm:$0xf]
    %v286 = vld [vmem:[%s1 + $0x410] sm:$0xf]
    %v287 = vld [vmem:[%s1 + $0x414] sm:$0xf]
    %v288 = vld [vmem:[%s1 + $0x418] sm:$0xf]
    %v289 = vld [vmem:[%s1 + $0x41c] sm:$0xf]
    %v290 = vld [vmem:[%s1 + $0x420] sm:$0xf]
    %v291 = vld [vmem:[%s1 + $0x424] sm:$0xf]
    %v292 = vld [vmem:[%s1 + $0x428] sm:$0xf]
    %v293 = vld [vmem:[%s1 + $0x42c] sm:$0xf]
    %v294 = vld [vmem:[%s1 + $0x430] sm:$0xf]
    %v295 = vld [vmem:[%s1 + $0x434] sm:$0xf]
    %v296 = vld [vmem:[%s1 + $0x438] sm:$0xf]
    %v297 = vld [vmem:[%s1 + $0x43c] sm:$0xf]
    %v298 = vld [vmem:[%s1 + $0x440] sm:$0xf]
    %v299 = vld [vmem:[%s1 + $0x444] sm:$0xf]
    %v300 = vld [vmem:[%s1 + $0x448] sm:$0xf]
    %v301 = vld [vmem:[%s1 + $0x44c] sm:$0xf]
    %v302 = vld [vmem:[%s1 + $0x450] sm:$0xf]
    %v303 = vld [vmem:[%s1 + $0x454] sm:$0xf]
    %v304 = vld [vmem:[%s1 + $0x458] sm:$0xf]
    %v305 = vld [vmem:[%s1 + $0x45c] sm:$0xf]
    %v306 = vld [vmem:[%s1 + $0x460] sm:$0xf]
    %v307 = vld [vmem:[%s1 + $0x464] sm:$0xf]
    %v308 = vld [vmem:[%s1 + $0x468] sm:$0xf]
    %v309 = vld [vmem:[%s1 + $0x46c] sm:$0xf]
    %v310 = vld [vmem:[%s1 + $0x470] sm:$0xf]
    %v311 = vld [vmem:[%s1 + $0x474] sm:$0xf]
    %v312 = vld [vmem:[%s1 + $0x478] sm:$0xf]
    %v313 = vld [vmem:[%s1 + $0x47c] sm:$0xf]
    %v314 = vld [vmem:[%s1 + $0x480] sm:$0xf]
    %v315 = vld [vmem:[%s1 + $0x484] sm:$0xf]
    %v316 = vld [vmem:[%s1 + $0x488] sm:$0xf]
    %v317 = vld [vmem:[%s1 + $0x48c] sm:$0xf]
    %v318 = vld [vmem:[%s1 + $0x490] sm:$0xf]
    %v319 = vld [vmem:[%s1 + $0x494] sm:$0xf]
    %v320 = vld [vmem:[%s1 + $0x498] sm:$0xf]
    %v321 = vld [vmem:[%s1 + $0x49c] sm:$0xf]
    %v322 = vld [vmem:[%s1 + $0x4a0] sm:$0xf]
    %v323 = vld [vmem:[%s1 + $0x4a4] sm:$0xf]
    %v324 = vld [vmem:[%s1 + $0x4a8] sm:$0xf]
    %v325 = vld [vmem:[%s1 + $0x4ac] sm:$0xf]
    %v326 = vld [vmem:[%s1 + $0x4b0] sm:$0xf]
    %v327 = vld [vmem:[%s1 + $0x4b4] sm:$0xf]
    %v328 = vld [vmem:[%s1 + $0x4b8] sm:$0xf]
    %v329 = vld [vmem:[%s1 + $0x4bc] sm:$0xf]
    %v330 = vld [vmem:[%s1 + $0x4c0] sm:$0xf]
    %v331 = vld [vmem:[%s1 + $0x4c4] sm:$0xf]
    %v332 = vld [vmem:[%s1 + $0x4c8] sm:$0xf]
    %v333 = vld [vmem:[%s1 + $0x4cc] sm:$0xf]
    %v334 = vld [vmem:[%s1 + $0x4d0] sm:$0xf]
    %v335 = vld [vmem:[%s1 + $0x4d4] sm:$0xf]
    %v336 = vld [vmem:[%s1 + $0x4d8] sm:$0xf]
    %v337 = vld [vmem:[%s1 + $0x4dc] sm:$0xf]
    %v338 = vld [vmem:[%s1 + $0x4e0] sm:$0xf]
    %v339 = vld [vmem:[%s1 + $0x4e4] sm:$0xf]
    %v340 = vld [vmem:[%s1 + $0x4e8] sm:$0xf]
    %v341 = vld [vmem:[%s1 + $0x4ec] sm:$0xf]
    %v342 = vld [vmem:[%s1 + $0x4f0] sm:$0xf]
    %v343 = vld [vmem:[%s1 + $0x4f4] sm:$0xf]
    %v344 = vld [vmem:[%s1 + $0x4f8] sm:$0xf]
    %v345 = vld [vmem:[%s1 + $0x4fc] sm:$0xf]
    %v346 = vld [vmem:[%s1 + $0x500] sm:$0xf]
    %v347 = vld [vmem:[%s1 + $0x504] sm:$0xf]
    %v348 = vld [vmem:[%s1 + $0x508] sm:$0xf]
    %v349 = vld [vmem:[%s1 + $0x50c] sm:$0xf]
    %v350 = vld [vmem:[%s1 + $0x510] sm:$0xf]
    %v351 = vld [vmem:[%s1 + $0x514] sm:$0xf]
    %v352 = vld [vmem:[%s1 + $0x518] sm:$0xf]
    %v353 = vld [vmem:[%s1 + $0x51c] sm:$0xf]
    %v354 = vld [vmem:[%s1 + $0x520] sm:$0xf]
    %v355 = vld [vmem:[%s1 + $0x524] sm:$0xf]
    %v356 = vld [vmem:[%s1 + $0x528] sm:$0xf]
    %v357 = vld [vmem:[%s1 + $0x52c] sm:$0xf]
    %v358 = vld [vmem:[%s1 + $0x530] sm:$0xf]
    %v359 = vld [vmem:[%s1 + $0x534] sm:$0xf]
    %v360 = vld [vmem:[%s1 + $0x538] sm:$0xf]
    %v361 = vld [vmem:[%s1 + $0x53c] sm:$0xf]
    %v362 = vld [vmem:[%s1 + $0x540] sm:$0xf]
    %v363 = vld [vmem:[%s1 + $0x544] sm:$0xf]
    %v364 = vld [vmem:[%s1 + $0x548] sm:$0xf]
    %v365 = vld [vmem:[%s1 + $0x54c] sm:$0xf]
    %v366 = vld [vmem:[%s1 + $0x550] sm:$0xf]
    %v367 = vld [vmem:[%s1 + $0x554] sm:$0xf]
    %v368 = vld [vmem:[%s1 + $0x558] sm:$0xf]
    %v369 = vld [vmem:[%s1 + $0x55c] sm:$0xf]
    %v370 = vld [vmem:[%s1 + $0x560] sm:$0xf]
    %v371 = vld [vmem:[%s1 + $0x564] sm:$0xf]
    %v372 = vld [vmem:[%s1 + $0x568] sm:$0xf]
    %v373 = vld [vmem:[%s1 + $0x56c] sm:$0xf]
    %v374 = vld [vmem:[%s1 + $0x570] sm:$0xf]
    %v375 = vld [vmem:[%s1 + $0x574] sm:$0xf]
    %v376 = vld [vmem:[%s1 + $0x578] sm:$0xf]
    %v377 = vld [vmem:[%s1 + $0x57c] sm:$0xf]
    %v378 = vld [vmem:[%s1 + $0x580] sm:$0xf]
    %v379 = vld [vmem:[%s1 + $0x584] sm:$0xf]
    %v380 = vld [vmem:[%s1 + $0x588] sm:$0xf]
    %v381 = vld [vmem:[%s1 + $0x58c] sm:$0xf]
    %v382 = vld [vmem:[%s1 + $0x590] sm:$0xf]
    %v383 = vld [vmem:[%s1 + $0x594] sm:$0xf]
    %v384 = vld [vmem:[%s1 + $0x598] sm:$0xf]
    %v385 = vld [vmem:[%s1 + $0x59c] sm:$0xf]
    %v386 = vld [vmem:[%s1 + $0x5a0] sm:$0xf]
    %v387 = vld [vmem:[%s1 + $0x5a4] sm:$0xf]
    %v388 = vld [vmem:[%s1 + $0x5a8] sm:$0xf]
    %v389 = vld [vmem:[%s1 + $0x5ac] sm:$0xf]
    %v390 = vld [vmem:[%s1 + $0x5b0] sm:$0xf]
    %v391 = vld [vmem:[%s1 + $0x5b4] sm:$0xf]
    %v392 = vld [vmem:[%s1 + $0x5b8] sm:$0xf]
    %v393 = vld [vmem:[%s1 + $0x5bc] sm:$0xf]
    %v394 = vld [vmem:[%s1 + $0x5c0] sm:$0xf]
    %v395 = vld [vmem:[%s1 + $0x5c4] sm:$0xf]
    %v396 = vld [vmem:[%s1 + $0x5c8] sm:$0xf]
    %v397 = vld [vmem:[%s1 + $0x5cc] sm:$0xf]
    %v398 = vld [vmem:[%s1 + $0x5d0] sm:$0xf]
    %v399 = vld [vmem:[%s1 + $0x5d4] sm:$0xf]
    %v400 = vld [vmem:[%s1 + $0x5d8] sm:$0xf]
    %v401 = vld [vmem:[%s1 + $0x5dc] sm:$0xf]
    %v402 = vld [vmem:[%s1 + $0x5e0] sm:$0xf]
    %v403 = vld [vmem:[%s1 + $0x5e4] sm:$0xf]
    %v404 = vld [vmem:[%s1 + $0x5e8] sm:$0xf]
    %v405 = vld [vmem:[%s1 + $0x5ec] sm:$0xf]
    %v406 = vld [vmem:[%s1 + $0x5f0] sm:$0xf]
    %v407 = vld [vmem:[%s1 + $0x5f4] sm:$0xf]
    %v408 = vld [vmem:[%s1 + $0x5f8] sm:$0xf]
    %v409 = vld [vmem:[%s1 + $0x5fc] sm:$0xf]
    %v410 = vld [vmem:[%s1 + $0x600] sm:$0xf]
    %v411 = vld [vmem:[%s1 + $0x604] sm:$0xf]
    %v412 = vld [vmem:[%s1 + $0x608] sm:$0xf]
    %v413 = vld [vmem:[%s1 + $0x60c] sm:$0xf]
    %v414 = vld [vmem:[%s1 + $0x610] sm:$0xf]
    %v415 = vld [vmem:[%s1 + $0x614] sm:$0xf]
    %v416 = vld [vmem:[%s1 + $0x618] sm:$0xf]
    %v417 = vld [vmem:[%s1 + $0x61c] sm:$0xf]
    %v418 = vld [vmem:[%s1 + $0x620] sm:$0xf]
    %v419 = vld [vmem:[%s1 + $0x624] sm:$0xf]
    %v420 = vld [vmem:[%s1 + $0x628] sm:$0xf]
    %v421 = vld [vmem:[%s1 + $0x62c] sm:$0xf]
    %v422 = vld [vmem:[%s1 + $0x630] sm:$0xf]
    %v423 = vld [vmem:[%s1 + $0x634] sm:$0xf]
    %v424 = vld [vmem:[%s1 + $0x638] sm:$0xf]
    %v425 = vld [vmem:[%s1 + $0x63c] sm:$0xf]
    %v426 = vld [vmem:[%s1 + $0x640] sm:$0xf]
    %v427 = vld [vmem:[%s1 + $0x644] sm:$0xf]
    %v428 = vld [vmem:[%s1 + $0x648] sm:$0xf]
    %v429 = vld [vmem:[%s1 + $0x64c] sm:$0xf]
    %v430 = vld [vmem:[%s1 + $0x650] sm:$0xf]
    %v431 = vld [vmem:[%s1 + $0x654] sm:$0xf]
    %v432 = vld [vmem:[%s1 + $0x658] sm:$0xf]
    %v433 = vld [vmem:[%s1 + $0x65c] sm:$0xf]
    %v434 = vld [vmem:[%s1 + $0x660] sm:$0xf]
    %v435 = vld [vmem:[%s1 + $0x664] sm:$0xf]
    %v436 = vld [vmem:[%s1 + $0x668] sm:$0xf]
    %v437 = vld [vmem:[%s1 + $0x66c] sm:$0xf]
    %v438 = vld [vmem:[%s1 + $0x670] sm:$0xf]
    %v439 = vld [vmem:[%s1 + $0x674] sm:$0xf]
    %v440 = vld [vmem:[%s1 + $0x678] sm:$0xf]
    %v441 = vld [vmem:[%s1 + $0x67c] sm:$0xf]
    %v442 = vld [vmem:[%s1 + $0x680] sm:$0xf]
    %v443 = vld [vmem:[%s1 + $0x684] sm:$0xf]
    %v444 = vld [vmem:[%s1 + $0x688] sm:$0xf]
    %v445 = vld [vmem:[%s1 + $0x68c] sm:$0xf]
    %v446 = vld [vmem:[%s1 + $0x690] sm:$0xf]
    %v447 = vld [vmem:[%s1 + $0x694] sm:$0xf]
    %v448 = vld [vmem:[%s1 + $0x698] sm:$0xf]
    %v449 = vld [vmem:[%s1 + $0x69c] sm:$0xf]
    %v450 = vld [vmem:[%s1 + $0x6a0] sm:$0xf]
    %v451 = vld [vmem:[%s1 + $0x6a4] sm:$0xf]
    %v452 = vld [vmem:[%s1 + $0x6a8] sm:$0xf]
    %v453 = vld [vmem:[%s1 + $0x6ac] sm:$0xf]
    %v454 = vld [vmem:[%s1 + $0x6b0] sm:$0xf]
    %v455 = vld [vmem:[%s1 + $0x6b4] sm:$0xf]
    %v456 = vld [vmem:[%s1 + $0x6b8] sm:$0xf]
    %v457 = vld [vmem:[%s1 + $0x6bc] sm:$0xf]
    %v458 = vld [vmem:[%s1 + $0x6c0] sm:$0xf]
    %v459 = vld [vmem:[%s1 + $0x6c4] sm:$0xf]
    %v460 = vld [vmem:[%s1 + $0x6c8] sm:$0xf]
    %v461 = vld [vmem:[%s1 + $0x6cc] sm:$0xf]
    %v462 = vld [vmem:[%s1 + $0x6d0] sm:$0xf]
    %v463 = vld [vmem:[%s1 + $0x6d4] sm:$0xf]
    %v464 = vld [vmem:[%s1 + $0x6d8] sm:$0xf]
    %v465 = vld [vmem:[%s1 + $0x6dc] sm:$0xf]
    %v466 = vld [vmem:[%s1 + $0x6e0] sm:$0xf]
    %v467 = vld [vmem:[%s1 + $0x6e4] sm:$0xf]
    %v468 = vld [vmem:[%s1 + $0x6e8] sm:$0xf]
    %v469 = vld [vmem:[%s1 + $0x6ec] sm:$0xf]
    %v470 = vld [vmem:[%s1 + $0x6f0] sm:$0xf]
    %v471 = vld [vmem:[%s1 + $0x6f4] sm:$0xf]
    %v472 = vld [vmem:[%s1 + $0x6f8] sm:$0xf]
    %v473 = vld [vmem:[%s1 + $0x6fc] sm:$0xf]
    %v474 = vld [vmem:[%s1 + $0x700] sm:$0xf]
    %v475 = vld [vmem:[%s1 + $0x704] sm:$0xf]
    %v476 = vld [vmem:[%s1 + $0x708] sm:$0xf]
    %v477 = vld [vmem:[%s1 + $0x70c] sm:$0xf]
    %v478 = vld [vmem:[%s1 + $0x710] sm:$0xf]
    %v479 = vld [vmem:[%s1 + $0x714] sm:$0xf]
    %v480 = vld [vmem:[%s1 + $0x718] sm:$0xf]
    %v481 = vld [vmem:[%s1 + $0x71c] sm:$0xf]
    %v482 = vld [vmem:[%s1 + $0x720] sm:$0xf]
    %v483 = vld [vmem:[%s1 + $0x724] sm:$0xf]
    %v484 = vld [vmem:[%s1 + $0x728] sm:$0xf]
    %v485 = vld [vmem:[%s1 + $0x72c] sm:$0xf]
    %v486 = vld [vmem:[%s1 + $0x730] sm:$0xf]
    %v487 = vld [vmem:[%s1 + $0x734] sm:$0xf]
    %v488 = vld [vmem:[%s1 + $0x738] sm:$0xf]
    %v489 = vld [vmem:[%s1 + $0x73c] sm:$0xf]
    %v490 = vld [vmem:[%s1 + $0x740] sm:$0xf]
    %v491 = vld [vmem:[%s1 + $0x744] sm:$0xf]
    %v492 = vld [vmem:[%s1 + $0x748] sm:$0xf]
    %v493 = vld [vmem:[%s1 + $0x74c] sm:$0xf]
    %v494 = vld [vmem:[%s1 + $0x750] sm:$0xf]
    %v495 = vld [vmem:[%s1 + $0x754] sm:$0xf]
    %v496 = vld [vmem:[%s1 + $0x758] sm:$0xf]
    %v497 = vld [vmem:[%s1 + $0x75c] sm:$0xf]
    %v498 = vld [vmem:[%s1 + $0x760] sm:$0xf]
    %v499 = vld [vmem:[%s1 + $0x764] sm:$0xf]
    %v500 = vld [vmem:[%s1 + $0x768] sm:$0xf]
    %v501 = vld [vmem:[%s1 + $0x76c] sm:$0xf]
    %v502 = vld [vmem:[%s1 + $0x770] sm:$0xf]
    %v503 = vld [vmem:[%s1 + $0x774] sm:$0xf]
    %v504 = vld [vmem:[%s1 + $0x778] sm:$0xf]
    %v505 = vld [vmem:[%s1 + $0x77c] sm:$0xf]
    %v506 = vld [vmem:[%s1 + $0x780] sm:$0xf]
    %v507 = vld [vmem:[%s1 + $0x784] sm:$0xf]
    %v508 = vld [vmem:[%s1 + $0x788] sm:$0xf]
    %v509 = vld [vmem:[%s1 + $0x78c] sm:$0xf]
    %v510 = vld [vmem:[%s1 + $0x790] sm:$0xf]
    %v511 = vld [vmem:[%s1 + $0x794] sm:$0xf]
    %v512 = vld [vmem:[%s1 + $0x798] sm:$0xf]
    %v513 = vld [vmem:[%s1 + $0x79c] sm:$0xf]
    %v514 = vld [vmem:[%s1 + $0x7a0] sm:$0xf]
    %v515 = vld [vmem:[%s1 + $0x7a4] sm:$0xf]
    %v516 = vld [vmem:[%s1 + $0x7a8] sm:$0xf]
    %v517 = vld [vmem:[%s1 + $0x7ac] sm:$0xf]
    %v518 = vld [vmem:[%s1 + $0x7b0] sm:$0xf]
    %v519 = vld [vmem:[%s1 + $0x7b4] sm:$0xf]
    %v520 = vld [vmem:[%s1 + $0x7b8] sm:$0xf]
    %v521 = vld [vmem:[%s1 + $0x7bc] sm:$0xf]
    %v522 = vld [vmem:[%s1 + $0x7c0] sm:$0xf]
    %v523 = vld [vmem:[%s1 + $0x7c4] sm:$0xf]
    %v524 = vld [vmem:[%s1 + $0x7c8] sm:$0xf]
    %v525 = vld [vmem:[%s1 + $0x7cc] sm:$0xf]
    %v526 = vld [vmem:[%s1 + $0x7d0] sm:$0xf]
    %v527 = vld [vmem:[%s1 + $0x7d4] sm:$0xf]
    %v528 = vld [vmem:[%s1 + $0x7d8] sm:$0xf]
    %v529 = vld [vmem:[%s1 + $0x7dc] sm:$0xf]
    %v530 = vld [vmem:[%s1 + $0x7e0] sm:$0xf]
    %v531 = vld [vmem:[%s1 + $0x7e4] sm:$0xf]
    %v532 = vld [vmem:[%s1 + $0x7e8] sm:$0xf]
    %v533 = vld [vmem:[%s1 + $0x7ec] sm:$0xf]
    %v534 = vld [vmem:[%s1 + $0x7f0] sm:$0xf]
    %v535 = vld [vmem:[%s1 + $0x7f4] sm:$0xf]
    %v536 = vld [vmem:[%s1 + $0x7f8] sm:$0xf]
    %v537 = vld [vmem:[%s1 + $0x7fc] sm:$0xf]
    %539 = vst [vmem:[#allocation1] ss:$9 sm:$0xff] %v22
    %v540 = vld [vmem:[#allocation1] sm:$0xff]
    %v541 = vld [vmem:[#allocation1 + $0x9] sm:$0xff]
    %v542 = vld [vmem:[#allocation1 + $0x12] sm:$0xff]
    %v543 = vld [vmem:[#allocation1 + $0x1b] sm:$0xff]
    %v544 = vld [vmem:[#allocation1 + $0x24] sm:$0xff]
    %v545 = vld [vmem:[#allocation1 + $0x2d] sm:$0xff]
    %v546 = vld [vmem:[#allocation1 + $0x36] sm:$0xff]
    %v547 = vld [vmem:[#allocation1 + $0x3f] sm:$0xff]
    %549 = vst [vmem:[#allocation1] ss:$9 sm:$0xff] %v23
    %v550 = vld [vmem:[#allocation1] sm:$0xff]
    %v551 = vld [vmem:[#allocation1 + $0x9] sm:$0xff]
    %v552 = vld [vmem:[#allocation1 + $0x12] sm:$0xff]
    %v553 = vld [vmem:[#allocation1 + $0x1b] sm:$0xff]
    %v554 = vld [vmem:[#allocation1 + $0x24] sm:$0xff]
    %v555 = vld [vmem:[#allocation1 + $0x2d] sm:$0xff]
    %v556 = vld [vmem:[#allocation1 + $0x36] sm:$0xff]
    %v557 = vld [vmem:[#allocation1 + $0x3f] sm:$0xff]
    %559 = vst [vmem:[#allocation1] ss:$9 sm:$0xff] %v24
    %v560 = vld [vmem:[#allocation1] sm:$0xff]
    %v561 = vld [vmem:[#allocation1 + $0x9] sm:$0xff]
    %v562 = vld [vmem:[#allocation1 + $0x12] sm:$0xff]
    %v563 = vld [vmem:[#allocation1 + $0x1b] sm:$0xff]
    %v564 = vld [vmem:[#allocation1 + $0x24] sm:$0xff]
    %v565 = vld [vmem:[#allocation1 + $0x2d] sm:$0xff]
    %v566 = vld [vmem:[#allocation1 + $0x36] sm:$0xff]
    %v567 = vld [vmem:[#allocation1 + $0x3f] sm:$0xff]
    %569 = vst [vmem:[#allocation1] ss:$9 sm:$0xff] %v25
    %v570 = vld [vmem:[#allocation1] sm:$0xff]
    %v571 = vld [vmem:[#allocation1 + $0x9] sm:$0xff]
    %v572 = vld [vmem:[#allocation1 + $0x12] sm:$0xff]
    %v573 = vld [vmem:[#allocation1 + $0x1b] sm:$0xff]
    %v574 = vld [vmem:[#allocation1 + $0x24] sm:$0xff]
    %v575 = vld [vmem:[#allocation1 + $0x2d] sm:$0xff]
    %v576 = vld [vmem:[#allocation1 + $0x36] sm:$0xff]
    %v577 = vld [vmem:[#allocation1 + $0x3f] sm:$0xff]
    %v1122 = vunpack.c.l.b16 %v26
    %v1123 = vunpack.c.l.b16 %v27
    %v1124 = vunpack.c.l.b16 %v28
    %v1125 = vunpack.c.l.b16 %v29
    %v1126 = vunpack.c.l.b16 %v30
    %v1127 = vunpack.c.l.b16 %v31
    %v1128 = vunpack.c.l.b16 %v32
    %v1129 = vunpack.c.l.b16 %v33
    %v1130 = vunpack.c.l.b16 %v34
    %v1131 = vunpack.c.l.b16 %v35
    %v1132 = vunpack.c.l.b16 %v36
    %v1133 = vunpack.c.l.b16 %v37
    %v1134 = vunpack.c.l.b16 %v38
    %v1135 = vunpack.c.l.b16 %v39
    %v1136 = vunpack.c.l.b16 %v40
    %v1137 = vunpack.c.l.b16 %v41
    %v1138 = vunpack.c.l.b16 %v42
    %v1139 = vunpack.c.l.b16 %v43
    %v1140 = vunpack.c.l.b16 %v44
    %v1141 = vunpack.c.l.b16 %v45
    %v1142 = vunpack.c.l.b16 %v46
    %v1143 = vunpack.c.l.b16 %v47
    %v1144 = vunpack.c.l.b16 %v48
    %v1145 = vunpack.c.l.b16 %v49
    %v1146 = vunpack.c.l.b16 %v50
    %v1147 = vunpack.c.l.b16 %v51
    %v1148 = vunpack.c.l.b16 %v52
    %v1149 = vunpack.c.l.b16 %v53
    %v1150 = vunpack.c.l.b16 %v54
    %v1151 = vunpack.c.l.b16 %v55
    %v1152 = vunpack.c.l.b16 %v56
    %v1153 = vunpack.c.l.b16 %v57
    %v1154 = vunpack.c.l.b16 %v58
    %v1155 = vunpack.c.l.b16 %v59
    %v1156 = vunpack.c.l.b16 %v60
    %v1157 = vunpack.c.l.b16 %v61
    %v1158 = vunpack.c.l.b16 %v62
    %v1159 = vunpack.c.l.b16 %v63
    %v1160 = vunpack.c.l.b16 %v64
    %v1161 = vunpack.c.l.b16 %v65
    %v1162 = vunpack.c.l.b16 %v66
    %v1163 = vunpack.c.l.b16 %v67
    %v1164 = vunpack.c.l.b16 %v68
    %v1165 = vunpack.c.l.b16 %v69
    %v1166 = vunpack.c.l.b16 %v70
    %v1167 = vunpack.c.l.b16 %v71
    %v1168 = vunpack.c.l.b16 %v72
    %v1169 = vunpack.c.l.b16 %v73
    %v1170 = vunpack.c.l.b16 %v74
    %v1171 = vunpack.c.l.b16 %v75
    %v1172 = vunpack.c.l.b16 %v76
    %v1173 = vunpack.c.l.b16 %v77
    %v1174 = vunpack.c.l.b16 %v78
    %v1175 = vunpack.c.l.b16 %v79
    %v1176 = vunpack.c.l.b16 %v80
    %v1177 = vunpack.c.l.b16 %v81
    %v1178 = vunpack.c.l.b16 %v82
    %v1179 = vunpack.c.l.b16 %v83
    %v1180 = vunpack.c.l.b16 %v84
    %v1181 = vunpack.c.l.b16 %v85
    %v1182 = vunpack.c.l.b16 %v86
    %v1183 = vunpack.c.l.b16 %v87
    %v1184 = vunpack.c.l.b16 %v88
    %v1185 = vunpack.c.l.b16 %v89
    %v1186 = vunpack.c.l.b16 %v90
    %v1187 = vunpack.c.l.b16 %v91
    %v1188 = vunpack.c.l.b16 %v92
    %v1189 = vunpack.c.l.b16 %v93
    %v1190 = vunpack.c.l.b16 %v94
    %v1191 = vunpack.c.l.b16 %v95
    %v1192 = vunpack.c.l.b16 %v96
    %v1193 = vunpack.c.l.b16 %v97
    %v1194 = vunpack.c.l.b16 %v98
    %v1195 = vunpack.c.l.b16 %v99
    %v1196 = vunpack.c.l.b16 %v100
    %v1197 = vunpack.c.l.b16 %v101
    %v1198 = vunpack.c.l.b16 %v102
    %v1199 = vunpack.c.l.b16 %v103
    %v1200 = vunpack.c.l.b16 %v104
    %v1201 = vunpack.c.l.b16 %v105
    %v1202 = vunpack.c.l.b16 %v106
    %v1203 = vunpack.c.l.b16 %v107
    %v1204 = vunpack.c.l.b16 %v108
    %v1205 = vunpack.c.l.b16 %v109
    %v1206 = vunpack.c.l.b16 %v110
    %v1207 = vunpack.c.l.b16 %v111
    %v1208 = vunpack.c.l.b16 %v112
    %v1209 = vunpack.c.l.b16 %v113
    %v1210 = vunpack.c.l.b16 %v114
    %v1211 = vunpack.c.l.b16 %v115
    %v1212 = vunpack.c.l.b16 %v116
    %v1213 = vunpack.c.l.b16 %v117
    %v1214 = vunpack.c.l.b16 %v118
    %v1215 = vunpack.c.l.b16 %v119
    %v1216 = vunpack.c.l.b16 %v120
    %v1217 = vunpack.c.l.b16 %v121
    %v1218 = vunpack.c.l.b16 %v122
    %v1219 = vunpack.c.l.b16 %v123
    %v1220 = vunpack.c.l.b16 %v124
    %v1221 = vunpack.c.l.b16 %v125
    %v1222 = vunpack.c.l.b16 %v126
    %v1223 = vunpack.c.l.b16 %v127
    %v1224 = vunpack.c.l.b16 %v128
    %v1225 = vunpack.c.l.b16 %v129
    %v1226 = vunpack.c.l.b16 %v130
    %v1227 = vunpack.c.l.b16 %v131
    %v1228 = vunpack.c.l.b16 %v132
    %v1229 = vunpack.c.l.b16 %v133
    %v1230 = vunpack.c.l.b16 %v134
    %v1231 = vunpack.c.l.b16 %v135
    %v1232 = vunpack.c.l.b16 %v136
    %v1233 = vunpack.c.l.b16 %v137
    %v1234 = vunpack.c.l.b16 %v138
    %v1235 = vunpack.c.l.b16 %v139
    %v1236 = vunpack.c.l.b16 %v140
    %v1237 = vunpack.c.l.b16 %v141
    %v1238 = vunpack.c.l.b16 %v142
    %v1239 = vunpack.c.l.b16 %v143
    %v1240 = vunpack.c.l.b16 %v144
    %v1241 = vunpack.c.l.b16 %v145
    %v1242 = vunpack.c.l.b16 %v146
    %v1243 = vunpack.c.l.b16 %v147
    %v1244 = vunpack.c.l.b16 %v148
    %v1245 = vunpack.c.l.b16 %v149
    %v1246 = vunpack.c.l.b16 %v150
    %v1247 = vunpack.c.l.b16 %v151
    %v1248 = vunpack.c.l.b16 %v152
    %v1249 = vunpack.c.l.b16 %v153
    %v1250 = vunpack.c.l.b16 %v154
    %v1251 = vunpack.c.l.b16 %v155
    %v1252 = vunpack.c.l.b16 %v156
    %v1253 = vunpack.c.l.b16 %v157
    %v1254 = vunpack.c.l.b16 %v158
    %v1255 = vunpack.c.l.b16 %v159
    %v1256 = vunpack.c.l.b16 %v160
    %v1257 = vunpack.c.l.b16 %v161
    %v1258 = vunpack.c.l.b16 %v162
    %v1259 = vunpack.c.l.b16 %v163
    %v1260 = vunpack.c.l.b16 %v164
    %v1261 = vunpack.c.l.b16 %v165
    %v1262 = vunpack.c.l.b16 %v166
    %v1263 = vunpack.c.l.b16 %v167
    %v1264 = vunpack.c.l.b16 %v168
    %v1265 = vunpack.c.l.b16 %v169
    %v1266 = vunpack.c.l.b16 %v170
    %v1267 = vunpack.c.l.b16 %v171
    %v1268 = vunpack.c.l.b16 %v172
    %v1269 = vunpack.c.l.b16 %v173
    %v1270 = vunpack.c.l.b16 %v174
    %v1271 = vunpack.c.l.b16 %v175
    %v1272 = vunpack.c.l.b16 %v176
    %v1273 = vunpack.c.l.b16 %v177
    %v1274 = vunpack.c.l.b16 %v178
    %v1275 = vunpack.c.l.b16 %v179
    %v1276 = vunpack.c.l.b16 %v180
    %v1277 = vunpack.c.l.b16 %v181
    %v1278 = vunpack.c.l.b16 %v182
    %v1279 = vunpack.c.l.b16 %v183
    %v1280 = vunpack.c.l.b16 %v184
    %v1281 = vunpack.c.l.b16 %v185
    %v1282 = vunpack.c.l.b16 %v186
    %v1283 = vunpack.c.l.b16 %v187
    %v1284 = vunpack.c.l.b16 %v188
    %v1285 = vunpack.c.l.b16 %v189
    %v1286 = vunpack.c.l.b16 %v190
    %v1287 = vunpack.c.l.b16 %v191
    %v1288 = vunpack.c.l.b16 %v192
    %v1289 = vunpack.c.l.b16 %v193
    %v1290 = vunpack.c.l.b16 %v194
    %v1291 = vunpack.c.l.b16 %v195
    %v1292 = vunpack.c.l.b16 %v196
    %v1293 = vunpack.c.l.b16 %v197
    %v1294 = vunpack.c.l.b16 %v198
    %v1295 = vunpack.c.l.b16 %v199
    %v1296 = vunpack.c.l.b16 %v200
    %v1297 = vunpack.c.l.b16 %v201
    %v1298 = vunpack.c.l.b16 %v202
    %v1299 = vunpack.c.l.b16 %v203
    %v1300 = vunpack.c.l.b16 %v204
    %v1301 = vunpack.c.l.b16 %v205
    %v1302 = vunpack.c.l.b16 %v206
    %v1303 = vunpack.c.l.b16 %v207
    %v1304 = vunpack.c.l.b16 %v208
    %v1305 = vunpack.c.l.b16 %v209
    %v1306 = vunpack.c.l.b16 %v210
    %v1307 = vunpack.c.l.b16 %v211
    %v1308 = vunpack.c.l.b16 %v212
    %v1309 = vunpack.c.l.b16 %v213
    %v1310 = vunpack.c.l.b16 %v214
    %v1311 = vunpack.c.l.b16 %v215
    %v1312 = vunpack.c.l.b16 %v216
    %v1313 = vunpack.c.l.b16 %v217
    %v1314 = vunpack.c.l.b16 %v218
    %v1315 = vunpack.c.l.b16 %v219
    %v1316 = vunpack.c.l.b16 %v220
    %v1317 = vunpack.c.l.b16 %v221
    %v1318 = vunpack.c.l.b16 %v222
    %v1319 = vunpack.c.l.b16 %v223
    %v1320 = vunpack.c.l.b16 %v224
    %v1321 = vunpack.c.l.b16 %v225
    %v1322 = vunpack.c.l.b16 %v226
    %v1323 = vunpack.c.l.b16 %v227
    %v1324 = vunpack.c.l.b16 %v228
    %v1325 = vunpack.c.l.b16 %v229
    %v1326 = vunpack.c.l.b16 %v230
    %v1327 = vunpack.c.l.b16 %v231
    %v1328 = vunpack.c.l.b16 %v232
    %v1329 = vunpack.c.l.b16 %v233
    %v1330 = vunpack.c.l.b16 %v234
    %v1331 = vunpack.c.l.b16 %v235
    %v1332 = vunpack.c.l.b16 %v236
    %v1333 = vunpack.c.l.b16 %v237
    %v1334 = vunpack.c.l.b16 %v238
    %v1335 = vunpack.c.l.b16 %v239
    %v1336 = vunpack.c.l.b16 %v240
    %v1337 = vunpack.c.l.b16 %v241
    %v1338 = vunpack.c.l.b16 %v242
    %v1339 = vunpack.c.l.b16 %v243
    %v1340 = vunpack.c.l.b16 %v244
    %v1341 = vunpack.c.l.b16 %v245
    %v1342 = vunpack.c.l.b16 %v246
    %v1343 = vunpack.c.l.b16 %v247
    %v1344 = vunpack.c.l.b16 %v248
    %v1345 = vunpack.c.l.b16 %v249
    %v1346 = vunpack.c.l.b16 %v250
    %v1347 = vunpack.c.l.b16 %v251
    %v1348 = vunpack.c.l.b16 %v252
    %v1349 = vunpack.c.l.b16 %v253
    %v1350 = vunpack.c.l.b16 %v254
    %v1351 = vunpack.c.l.b16 %v255
    %v1352 = vunpack.c.l.b16 %v256
    %v1353 = vunpack.c.l.b16 %v257
    %v1354 = vunpack.c.l.b16 %v258
    %v1355 = vunpack.c.l.b16 %v259
    %v1356 = vunpack.c.l.b16 %v260
    %v1357 = vunpack.c.l.b16 %v261
    %v1358 = vunpack.c.l.b16 %v262
    %v1359 = vunpack.c.l.b16 %v263
    %v1360 = vunpack.c.l.b16 %v264
    %v1361 = vunpack.c.l.b16 %v265
    %v1362 = vunpack.c.l.b16 %v266
    %v1363 = vunpack.c.l.b16 %v267
    %v1364 = vunpack.c.l.b16 %v268
    %v1365 = vunpack.c.l.b16 %v269
    %v1366 = vunpack.c.l.b16 %v270
    %v1367 = vunpack.c.l.b16 %v271
    %v1368 = vunpack.c.l.b16 %v272
    %v1369 = vunpack.c.l.b16 %v273
    %v1370 = vunpack.c.l.b16 %v274
    %v1371 = vunpack.c.l.b16 %v275
    %v1372 = vunpack.c.l.b16 %v276
    %v1373 = vunpack.c.l.b16 %v277
    %v1374 = vunpack.c.l.b16 %v278
    %v1375 = vunpack.c.l.b16 %v279
    %v1376 = vunpack.c.l.b16 %v280
    %v1377 = vunpack.c.l.b16 %v281
    %v1378 = vunpack.c.l.b16 %v282
    %v1379 = vunpack.c.l.b16 %v283
    %v1380 = vunpack.c.l.b16 %v284
    %v1381 = vunpack.c.l.b16 %v285
    %v1382 = vunpack.c.l.b16 %v286
    %v1383 = vunpack.c.l.b16 %v287
    %v1384 = vunpack.c.l.b16 %v288
    %v1385 = vunpack.c.l.b16 %v289
    %v1386 = vunpack.c.l.b16 %v290
    %v1387 = vunpack.c.l.b16 %v291
    %v1388 = vunpack.c.l.b16 %v292
    %v1389 = vunpack.c.l.b16 %v293
    %v1390 = vunpack.c.l.b16 %v294
    %v1391 = vunpack.c.l.b16 %v295
    %v1392 = vunpack.c.l.b16 %v296
    %v1393 = vunpack.c.l.b16 %v297
    %v1394 = vunpack.c.l.b16 %v298
    %v1395 = vunpack.c.l.b16 %v299
    %v1396 = vunpack.c.l.b16 %v300
    %v1397 = vunpack.c.l.b16 %v301
    %v1398 = vunpack.c.l.b16 %v302
    %v1399 = vunpack.c.l.b16 %v303
    %v1400 = vunpack.c.l.b16 %v304
    %v1401 = vunpack.c.l.b16 %v305
    %v1402 = vunpack.c.l.b16 %v306
    %v1403 = vunpack.c.l.b16 %v307
    %v1404 = vunpack.c.l.b16 %v308
    %v1405 = vunpack.c.l.b16 %v309
    %v1406 = vunpack.c.l.b16 %v310
    %v1407 = vunpack.c.l.b16 %v311
    %v1408 = vunpack.c.l.b16 %v312
    %v1409 = vunpack.c.l.b16 %v313
    %v1410 = vunpack.c.l.b16 %v314
    %v1411 = vunpack.c.l.b16 %v315
    %v1412 = vunpack.c.l.b16 %v316
    %v1413 = vunpack.c.l.b16 %v317
    %v1414 = vunpack.c.l.b16 %v318
    %v1415 = vunpack.c.l.b16 %v319
    %v1416 = vunpack.c.l.b16 %v320
    %v1417 = vunpack.c.l.b16 %v321
    %v1418 = vunpack.c.l.b16 %v322
    %v1419 = vunpack.c.l.b16 %v323
    %v1420 = vunpack.c.l.b16 %v324
    %v1421 = vunpack.c.l.b16 %v325
    %v1422 = vunpack.c.l.b16 %v326
    %v1423 = vunpack.c.l.b16 %v327
    %v1424 = vunpack.c.l.b16 %v328
    %v1425 = vunpack.c.l.b16 %v329
    %v1426 = vunpack.c.l.b16 %v330
    %v1427 = vunpack.c.l.b16 %v331
    %v1428 = vunpack.c.l.b16 %v332
    %v1429 = vunpack.c.l.b16 %v333
    %v1430 = vunpack.c.l.b16 %v334
    %v1431 = vunpack.c.l.b16 %v335
    %v1432 = vunpack.c.l.b16 %v336
    %v1433 = vunpack.c.l.b16 %v337
    %v1434 = vunpack.c.l.b16 %v338
    %v1435 = vunpack.c.l.b16 %v339
    %v1436 = vunpack.c.l.b16 %v340
    %v1437 = vunpack.c.l.b16 %v341
    %v1438 = vunpack.c.l.b16 %v342
    %v1439 = vunpack.c.l.b16 %v343
    %v1440 = vunpack.c.l.b16 %v344
    %v1441 = vunpack.c.l.b16 %v345
    %v1442 = vunpack.c.l.b16 %v346
    %v1443 = vunpack.c.l.b16 %v347
    %v1444 = vunpack.c.l.b16 %v348
    %v1445 = vunpack.c.l.b16 %v349
    %v1446 = vunpack.c.l.b16 %v350
    %v1447 = vunpack.c.l.b16 %v351
    %v1448 = vunpack.c.l.b16 %v352
    %v1449 = vunpack.c.l.b16 %v353
    %v1450 = vunpack.c.l.b16 %v354
    %v1451 = vunpack.c.l.b16 %v355
    %v1452 = vunpack.c.l.b16 %v356
    %v1453 = vunpack.c.l.b16 %v357
    %v1454 = vunpack.c.l.b16 %v358
    %v1455 = vunpack.c.l.b16 %v359
    %v1456 = vunpack.c.l.b16 %v360
    %v1457 = vunpack.c.l.b16 %v361
    %v1458 = vunpack.c.l.b16 %v362
    %v1459 = vunpack.c.l.b16 %v363
    %v1460 = vunpack.c.l.b16 %v364
    %v1461 = vunpack.c.l.b16 %v365
    %v1462 = vunpack.c.l.b16 %v366
    %v1463 = vunpack.c.l.b16 %v367
    %v1464 = vunpack.c.l.b16 %v368
    %v1465 = vunpack.c.l.b16 %v369
    %v1466 = vunpack.c.l.b16 %v370
    %v1467 = vunpack.c.l.b16 %v371
    %v1468 = vunpack.c.l.b16 %v372
    %v1469 = vunpack.c.l.b16 %v373
    %v1470 = vunpack.c.l.b16 %v374
    %v1471 = vunpack.c.l.b16 %v375
    %v1472 = vunpack.c.l.b16 %v376
    %v1473 = vunpack.c.l.b16 %v377
    %v1474 = vunpack.c.l.b16 %v378
    %v1475 = vunpack.c.l.b16 %v379
    %v1476 = vunpack.c.l.b16 %v380
    %v1477 = vunpack.c.l.b16 %v381
    %v1478 = vunpack.c.l.b16 %v382
    %v1479 = vunpack.c.l.b16 %v383
    %v1480 = vunpack.c.l.b16 %v384
    %v1481 = vunpack.c.l.b16 %v385
    %v1482 = vunpack.c.l.b16 %v386
    %v1483 = vunpack.c.l.b16 %v387
    %v1484 = vunpack.c.l.b16 %v388
    %v1485 = vunpack.c.l.b16 %v389
    %v1486 = vunpack.c.l.b16 %v390
    %v1487 = vunpack.c.l.b16 %v391
    %v1488 = vunpack.c.l.b16 %v392
    %v1489 = vunpack.c.l.b16 %v393
    %v1490 = vunpack.c.l.b16 %v394
    %v1491 = vunpack.c.l.b16 %v395
    %v1492 = vunpack.c.l.b16 %v396
    %v1493 = vunpack.c.l.b16 %v397
    %v1494 = vunpack.c.l.b16 %v398
    %v1495 = vunpack.c.l.b16 %v399
    %v1496 = vunpack.c.l.b16 %v400
    %v1497 = vunpack.c.l.b16 %v401
    %v1498 = vunpack.c.l.b16 %v402
    %v1499 = vunpack.c.l.b16 %v403
    %v1500 = vunpack.c.l.b16 %v404
    %v1501 = vunpack.c.l.b16 %v405
    %v1502 = vunpack.c.l.b16 %v406
    %v1503 = vunpack.c.l.b16 %v407
    %v1504 = vunpack.c.l.b16 %v408
    %v1505 = vunpack.c.l.b16 %v409
    %v1506 = vunpack.c.l.b16 %v410
    %v1507 = vunpack.c.l.b16 %v411
    %v1508 = vunpack.c.l.b16 %v412
    %v1509 = vunpack.c.l.b16 %v413
    %v1510 = vunpack.c.l.b16 %v414
    %v1511 = vunpack.c.l.b16 %v415
    %v1512 = vunpack.c.l.b16 %v416
    %v1513 = vunpack.c.l.b16 %v417
    %v1514 = vunpack.c.l.b16 %v418
    %v1515 = vunpack.c.l.b16 %v419
    %v1516 = vunpack.c.l.b16 %v420
    %v1517 = vunpack.c.l.b16 %v421
    %v1518 = vunpack.c.l.b16 %v422
    %v1519 = vunpack.c.l.b16 %v423
    %v1520 = vunpack.c.l.b16 %v424
    %v1521 = vunpack.c.l.b16 %v425
    %v1522 = vunpack.c.l.b16 %v426
    %v1523 = vunpack.c.l.b16 %v427
    %v1524 = vunpack.c.l.b16 %v428
    %v1525 = vunpack.c.l.b16 %v429
    %v1526 = vunpack.c.l.b16 %v430
    %v1527 = vunpack.c.l.b16 %v431
    %v1528 = vunpack.c.l.b16 %v432
    %v1529 = vunpack.c.l.b16 %v433
    %v1530 = vunpack.c.l.b16 %v434
    %v1531 = vunpack.c.l.b16 %v435
    %v1532 = vunpack.c.l.b16 %v436
    %v1533 = vunpack.c.l.b16 %v437
    %v1534 = vunpack.c.l.b16 %v438
    %v1535 = vunpack.c.l.b16 %v439
    %v1536 = vunpack.c.l.b16 %v440
    %v1537 = vunpack.c.l.b16 %v441
    %v1538 = vunpack.c.l.b16 %v442
    %v1539 = vunpack.c.l.b16 %v443
    %v1540 = vunpack.c.l.b16 %v444
    %v1541 = vunpack.c.l.b16 %v445
    %v1542 = vunpack.c.l.b16 %v446
    %v1543 = vunpack.c.l.b16 %v447
    %v1544 = vunpack.c.l.b16 %v448
    %v1545 = vunpack.c.l.b16 %v449
    %v1546 = vunpack.c.l.b16 %v450
    %v1547 = vunpack.c.l.b16 %v451
    %v1548 = vunpack.c.l.b16 %v452
    %v1549 = vunpack.c.l.b16 %v453
    %v1550 = vunpack.c.l.b16 %v454
    %v1551 = vunpack.c.l.b16 %v455
    %v1552 = vunpack.c.l.b16 %v456
    %v1553 = vunpack.c.l.b16 %v457
    %v1554 = vunpack.c.l.b16 %v458
    %v1555 = vunpack.c.l.b16 %v459
    %v1556 = vunpack.c.l.b16 %v460
    %v1557 = vunpack.c.l.b16 %v461
    %v1558 = vunpack.c.l.b16 %v462
    %v1559 = vunpack.c.l.b16 %v463
    %v1560 = vunpack.c.l.b16 %v464
    %v1561 = vunpack.c.l.b16 %v465
    %v1562 = vunpack.c.l.b16 %v466
    %v1563 = vunpack.c.l.b16 %v467
    %v1564 = vunpack.c.l.b16 %v468
    %v1565 = vunpack.c.l.b16 %v469
    %v1566 = vunpack.c.l.b16 %v470
    %v1567 = vunpack.c.l.b16 %v471
    %v1568 = vunpack.c.l.b16 %v472
    %v1569 = vunpack.c.l.b16 %v473
    %v1570 = vunpack.c.l.b16 %v474
    %v1571 = vunpack.c.l.b16 %v475
    %v1572 = vunpack.c.l.b16 %v476
    %v1573 = vunpack.c.l.b16 %v477
    %v1574 = vunpack.c.l.b16 %v478
    %v1575 = vunpack.c.l.b16 %v479
    %v1576 = vunpack.c.l.b16 %v480
    %v1577 = vunpack.c.l.b16 %v481
    %v1578 = vunpack.c.l.b16 %v482
    %v1579 = vunpack.c.l.b16 %v483
    %v1580 = vunpack.c.l.b16 %v484
    %v1581 = vunpack.c.l.b16 %v485
    %v1582 = vunpack.c.l.b16 %v486
    %v1583 = vunpack.c.l.b16 %v487
    %v1584 = vunpack.c.l.b16 %v488
    %v1585 = vunpack.c.l.b16 %v489
    %v1586 = vunpack.c.l.b16 %v490
    %v1587 = vunpack.c.l.b16 %v491
    %v1588 = vunpack.c.l.b16 %v492
    %v1589 = vunpack.c.l.b16 %v493
    %v1590 = vunpack.c.l.b16 %v494
    %v1591 = vunpack.c.l.b16 %v495
    %v1592 = vunpack.c.l.b16 %v496
    %v1593 = vunpack.c.l.b16 %v497
    %v1594 = vunpack.c.l.b16 %v498
    %v1595 = vunpack.c.l.b16 %v499
    %v1596 = vunpack.c.l.b16 %v500
    %v1597 = vunpack.c.l.b16 %v501
    %v1598 = vunpack.c.l.b16 %v502
    %v1599 = vunpack.c.l.b16 %v503
    %v1600 = vunpack.c.l.b16 %v504
    %v1601 = vunpack.c.l.b16 %v505
    %v1602 = vunpack.c.l.b16 %v506
    %v1603 = vunpack.c.l.b16 %v507
    %v1604 = vunpack.c.l.b16 %v508
    %v1605 = vunpack.c.l.b16 %v509
    %v1606 = vunpack.c.l.b16 %v510
    %v1607 = vunpack.c.l.b16 %v511
    %v1608 = vunpack.c.l.b16 %v512
    %v1609 = vunpack.c.l.b16 %v513
    %v1610 = vunpack.c.l.b16 %v514
    %v1611 = vunpack.c.l.b16 %v515
    %v1612 = vunpack.c.l.b16 %v516
    %v1613 = vunpack.c.l.b16 %v517
    %v1614 = vunpack.c.l.b16 %v518
    %v1615 = vunpack.c.l.b16 %v519
    %v1616 = vunpack.c.l.b16 %v520
    %v1617 = vunpack.c.l.b16 %v521
    %v1618 = vunpack.c.l.b16 %v522
    %v1619 = vunpack.c.l.b16 %v523
    %v1620 = vunpack.c.l.b16 %v524
    %v1621 = vunpack.c.l.b16 %v525
    %v1622 = vunpack.c.l.b16 %v526
    %v1623 = vunpack.c.l.b16 %v527
    %v1624 = vunpack.c.l.b16 %v528
    %v1625 = vunpack.c.l.b16 %v529
    %v1626 = vunpack.c.l.b16 %v530
    %v1627 = vunpack.c.l.b16 %v531
    %v1628 = vunpack.c.l.b16 %v532
    %v1629 = vunpack.c.l.b16 %v533
    %v1630 = vunpack.c.l.b16 %v534
    %v1631 = vunpack.c.l.b16 %v535
    %v1632 = vunpack.c.l.b16 %v536
    %v1633 = vunpack.c.l.b16 %v537
    %v1634 = vpack.c.b16 %v1123, %v1122
    %v1635 = vpack.c.b16 %v1125, %v1124
    %v1636 = vpack.c.b16 %v1127, %v1126
    %v1637 = vpack.c.b16 %v1129, %v1128
    %v1638 = vpack.c.b16 %v1131, %v1130
    %v1639 = vpack.c.b16 %v1133, %v1132
    %v1640 = vpack.c.b16 %v1135, %v1134
    %v1641 = vpack.c.b16 %v1137, %v1136
    %v1642 = vpack.c.b16 %v1139, %v1138
    %v1643 = vpack.c.b16 %v1141, %v1140
    %v1644 = vpack.c.b16 %v1143, %v1142
    %v1645 = vpack.c.b16 %v1145, %v1144
    %v1646 = vpack.c.b16 %v1147, %v1146
    %v1647 = vpack.c.b16 %v1149, %v1148
    %v1648 = vpack.c.b16 %v1151, %v1150
    %v1649 = vpack.c.b16 %v1153, %v1152
    %v1650 = vpack.c.b16 %v1155, %v1154
    %v1651 = vpack.c.b16 %v1157, %v1156
    %v1652 = vpack.c.b16 %v1159, %v1158
    %v1653 = vpack.c.b16 %v1161, %v1160
    %v1654 = vpack.c.b16 %v1163, %v1162
    %v1655 = vpack.c.b16 %v1165, %v1164
    %v1656 = vpack.c.b16 %v1167, %v1166
    %v1657 = vpack.c.b16 %v1169, %v1168
    %v1658 = vpack.c.b16 %v1171, %v1170
    %v1659 = vpack.c.b16 %v1173, %v1172
    %v1660 = vpack.c.b16 %v1175, %v1174
    %v1661 = vpack.c.b16 %v1177, %v1176
    %v1662 = vpack.c.b16 %v1179, %v1178
    %v1663 = vpack.c.b16 %v1181, %v1180
    %v1664 = vpack.c.b16 %v1183, %v1182
    %v1665 = vpack.c.b16 %v1185, %v1184
    %v1666 = vpack.c.b16 %v1187, %v1186
    %v1667 = vpack.c.b16 %v1189, %v1188
    %v1668 = vpack.c.b16 %v1191, %v1190
    %v1669 = vpack.c.b16 %v1193, %v1192
    %v1670 = vpack.c.b16 %v1195, %v1194
    %v1671 = vpack.c.b16 %v1197, %v1196
    %v1672 = vpack.c.b16 %v1199, %v1198
    %v1673 = vpack.c.b16 %v1201, %v1200
    %v1674 = vpack.c.b16 %v1203, %v1202
    %v1675 = vpack.c.b16 %v1205, %v1204
    %v1676 = vpack.c.b16 %v1207, %v1206
    %v1677 = vpack.c.b16 %v1209, %v1208
    %v1678 = vpack.c.b16 %v1211, %v1210
    %v1679 = vpack.c.b16 %v1213, %v1212
    %v1680 = vpack.c.b16 %v1215, %v1214
    %v1681 = vpack.c.b16 %v1217, %v1216
    %v1682 = vpack.c.b16 %v1219, %v1218
    %v1683 = vpack.c.b16 %v1221, %v1220
    %v1684 = vpack.c.b16 %v1223, %v1222
    %v1685 = vpack.c.b16 %v1225, %v1224
    %v1686 = vpack.c.b16 %v1227, %v1226
    %v1687 = vpack.c.b16 %v1229, %v1228
    %v1688 = vpack.c.b16 %v1231, %v1230
    %v1689 = vpack.c.b16 %v1233, %v1232
    %v1690 = vpack.c.b16 %v1235, %v1234
    %v1691 = vpack.c.b16 %v1237, %v1236
    %v1692 = vpack.c.b16 %v1239, %v1238
    %v1693 = vpack.c.b16 %v1241, %v1240
    %v1694 = vpack.c.b16 %v1243, %v1242
    %v1695 = vpack.c.b16 %v1245, %v1244
    %v1696 = vpack.c.b16 %v1247, %v1246
    %v1697 = vpack.c.b16 %v1249, %v1248
    %v1698 = vpack.c.b16 %v1251, %v1250
    %v1699 = vpack.c.b16 %v1253, %v1252
    %v1700 = vpack.c.b16 %v1255, %v1254
    %v1701 = vpack.c.b16 %v1257, %v1256
    %v1702 = vpack.c.b16 %v1259, %v1258
    %v1703 = vpack.c.b16 %v1261, %v1260
    %v1704 = vpack.c.b16 %v1263, %v1262
    %v1705 = vpack.c.b16 %v1265, %v1264
    %v1706 = vpack.c.b16 %v1267, %v1266
    %v1707 = vpack.c.b16 %v1269, %v1268
    %v1708 = vpack.c.b16 %v1271, %v1270
    %v1709 = vpack.c.b16 %v1273, %v1272
    %v1710 = vpack.c.b16 %v1275, %v1274
    %v1711 = vpack.c.b16 %v1277, %v1276
    %v1712 = vpack.c.b16 %v1279, %v1278
    %v1713 = vpack.c.b16 %v1281, %v1280
    %v1714 = vpack.c.b16 %v1283, %v1282
    %v1715 = vpack.c.b16 %v1285, %v1284
    %v1716 = vpack.c.b16 %v1287, %v1286
    %v1717 = vpack.c.b16 %v1289, %v1288
    %v1718 = vpack.c.b16 %v1291, %v1290
    %v1719 = vpack.c.b16 %v1293, %v1292
    %v1720 = vpack.c.b16 %v1295, %v1294
    %v1721 = vpack.c.b16 %v1297, %v1296
    %v1722 = vpack.c.b16 %v1299, %v1298
    %v1723 = vpack.c.b16 %v1301, %v1300
    %v1724 = vpack.c.b16 %v1303, %v1302
    %v1725 = vpack.c.b16 %v1305, %v1304
    %v1726 = vpack.c.b16 %v1307, %v1306
    %v1727 = vpack.c.b16 %v1309, %v1308
    %v1728 = vpack.c.b16 %v1311, %v1310
    %v1729 = vpack.c.b16 %v1313, %v1312
    %v1730 = vpack.c.b16 %v1315, %v1314
    %v1731 = vpack.c.b16 %v1317, %v1316
    %v1732 = vpack.c.b16 %v1319, %v1318
    %v1733 = vpack.c.b16 %v1321, %v1320
    %v1734 = vpack.c.b16 %v1323, %v1322
    %v1735 = vpack.c.b16 %v1325, %v1324
    %v1736 = vpack.c.b16 %v1327, %v1326
    %v1737 = vpack.c.b16 %v1329, %v1328
    %v1738 = vpack.c.b16 %v1331, %v1330
    %v1739 = vpack.c.b16 %v1333, %v1332
    %v1740 = vpack.c.b16 %v1335, %v1334
    %v1741 = vpack.c.b16 %v1337, %v1336
    %v1742 = vpack.c.b16 %v1339, %v1338
    %v1743 = vpack.c.b16 %v1341, %v1340
    %v1744 = vpack.c.b16 %v1343, %v1342
    %v1745 = vpack.c.b16 %v1345, %v1344
    %v1746 = vpack.c.b16 %v1347, %v1346
    %v1747 = vpack.c.b16 %v1349, %v1348
    %v1748 = vpack.c.b16 %v1351, %v1350
    %v1749 = vpack.c.b16 %v1353, %v1352
    %v1750 = vpack.c.b16 %v1355, %v1354
    %v1751 = vpack.c.b16 %v1357, %v1356
    %v1752 = vpack.c.b16 %v1359, %v1358
    %v1753 = vpack.c.b16 %v1361, %v1360
    %v1754 = vpack.c.b16 %v1363, %v1362
    %v1755 = vpack.c.b16 %v1365, %v1364
    %v1756 = vpack.c.b16 %v1367, %v1366
    %v1757 = vpack.c.b16 %v1369, %v1368
    %v1758 = vpack.c.b16 %v1371, %v1370
    %v1759 = vpack.c.b16 %v1373, %v1372
    %v1760 = vpack.c.b16 %v1375, %v1374
    %v1761 = vpack.c.b16 %v1377, %v1376
    %v1762 = vpack.c.b16 %v1379, %v1378
    %v1763 = vpack.c.b16 %v1381, %v1380
    %v1764 = vpack.c.b16 %v1383, %v1382
    %v1765 = vpack.c.b16 %v1385, %v1384
    %v1766 = vpack.c.b16 %v1387, %v1386
    %v1767 = vpack.c.b16 %v1389, %v1388
    %v1768 = vpack.c.b16 %v1391, %v1390
    %v1769 = vpack.c.b16 %v1393, %v1392
    %v1770 = vpack.c.b16 %v1395, %v1394
    %v1771 = vpack.c.b16 %v1397, %v1396
    %v1772 = vpack.c.b16 %v1399, %v1398
    %v1773 = vpack.c.b16 %v1401, %v1400
    %v1774 = vpack.c.b16 %v1403, %v1402
    %v1775 = vpack.c.b16 %v1405, %v1404
    %v1776 = vpack.c.b16 %v1407, %v1406
    %v1777 = vpack.c.b16 %v1409, %v1408
    %v1778 = vpack.c.b16 %v1411, %v1410
    %v1779 = vpack.c.b16 %v1413, %v1412
    %v1780 = vpack.c.b16 %v1415, %v1414
    %v1781 = vpack.c.b16 %v1417, %v1416
    %v1782 = vpack.c.b16 %v1419, %v1418
    %v1783 = vpack.c.b16 %v1421, %v1420
    %v1784 = vpack.c.b16 %v1423, %v1422
    %v1785 = vpack.c.b16 %v1425, %v1424
    %v1786 = vpack.c.b16 %v1427, %v1426
    %v1787 = vpack.c.b16 %v1429, %v1428
    %v1788 = vpack.c.b16 %v1431, %v1430
    %v1789 = vpack.c.b16 %v1433, %v1432
    %v1790 = vpack.c.b16 %v1435, %v1434
    %v1791 = vpack.c.b16 %v1437, %v1436
    %v1792 = vpack.c.b16 %v1439, %v1438
    %v1793 = vpack.c.b16 %v1441, %v1440
    %v1794 = vpack.c.b16 %v1443, %v1442
    %v1795 = vpack.c.b16 %v1445, %v1444
    %v1796 = vpack.c.b16 %v1447, %v1446
    %v1797 = vpack.c.b16 %v1449, %v1448
    %v1798 = vpack.c.b16 %v1451, %v1450
    %v1799 = vpack.c.b16 %v1453, %v1452
    %v1800 = vpack.c.b16 %v1455, %v1454
    %v1801 = vpack.c.b16 %v1457, %v1456
    %v1802 = vpack.c.b16 %v1459, %v1458
    %v1803 = vpack.c.b16 %v1461, %v1460
    %v1804 = vpack.c.b16 %v1463, %v1462
    %v1805 = vpack.c.b16 %v1465, %v1464
    %v1806 = vpack.c.b16 %v1467, %v1466
    %v1807 = vpack.c.b16 %v1469, %v1468
    %v1808 = vpack.c.b16 %v1471, %v1470
    %v1809 = vpack.c.b16 %v1473, %v1472
    %v1810 = vpack.c.b16 %v1475, %v1474
    %v1811 = vpack.c.b16 %v1477, %v1476
    %v1812 = vpack.c.b16 %v1479, %v1478
    %v1813 = vpack.c.b16 %v1481, %v1480
    %v1814 = vpack.c.b16 %v1483, %v1482
    %v1815 = vpack.c.b16 %v1485, %v1484
    %v1816 = vpack.c.b16 %v1487, %v1486
    %v1817 = vpack.c.b16 %v1489, %v1488
    %v1818 = vpack.c.b16 %v1491, %v1490
    %v1819 = vpack.c.b16 %v1493, %v1492
    %v1820 = vpack.c.b16 %v1495, %v1494
    %v1821 = vpack.c.b16 %v1497, %v1496
    %v1822 = vpack.c.b16 %v1499, %v1498
    %v1823 = vpack.c.b16 %v1501, %v1500
    %v1824 = vpack.c.b16 %v1503, %v1502
    %v1825 = vpack.c.b16 %v1505, %v1504
    %v1826 = vpack.c.b16 %v1507, %v1506
    %v1827 = vpack.c.b16 %v1509, %v1508
    %v1828 = vpack.c.b16 %v1511, %v1510
    %v1829 = vpack.c.b16 %v1513, %v1512
    %v1830 = vpack.c.b16 %v1515, %v1514
    %v1831 = vpack.c.b16 %v1517, %v1516
    %v1832 = vpack.c.b16 %v1519, %v1518
    %v1833 = vpack.c.b16 %v1521, %v1520
    %v1834 = vpack.c.b16 %v1523, %v1522
    %v1835 = vpack.c.b16 %v1525, %v1524
    %v1836 = vpack.c.b16 %v1527, %v1526
    %v1837 = vpack.c.b16 %v1529, %v1528
    %v1838 = vpack.c.b16 %v1531, %v1530
    %v1839 = vpack.c.b16 %v1533, %v1532
    %v1840 = vpack.c.b16 %v1535, %v1534
    %v1841 = vpack.c.b16 %v1537, %v1536
    %v1842 = vpack.c.b16 %v1539, %v1538
    %v1843 = vpack.c.b16 %v1541, %v1540
    %v1844 = vpack.c.b16 %v1543, %v1542
    %v1845 = vpack.c.b16 %v1545, %v1544
    %v1846 = vpack.c.b16 %v1547, %v1546
    %v1847 = vpack.c.b16 %v1549, %v1548
    %v1848 = vpack.c.b16 %v1551, %v1550
    %v1849 = vpack.c.b16 %v1553, %v1552
    %v1850 = vpack.c.b16 %v1555, %v1554
    %v1851 = vpack.c.b16 %v1557, %v1556
    %v1852 = vpack.c.b16 %v1559, %v1558
    %v1853 = vpack.c.b16 %v1561, %v1560
    %v1854 = vpack.c.b16 %v1563, %v1562
    %v1855 = vpack.c.b16 %v1565, %v1564
    %v1856 = vpack.c.b16 %v1567, %v1566
    %v1857 = vpack.c.b16 %v1569, %v1568
    %v1858 = vpack.c.b16 %v1571, %v1570
    %v1859 = vpack.c.b16 %v1573, %v1572
    %v1860 = vpack.c.b16 %v1575, %v1574
    %v1861 = vpack.c.b16 %v1577, %v1576
    %v1862 = vpack.c.b16 %v1579, %v1578
    %v1863 = vpack.c.b16 %v1581, %v1580
    %v1864 = vpack.c.b16 %v1583, %v1582
    %v1865 = vpack.c.b16 %v1585, %v1584
    %v1866 = vpack.c.b16 %v1587, %v1586
    %v1867 = vpack.c.b16 %v1589, %v1588
    %v1868 = vpack.c.b16 %v1591, %v1590
    %v1869 = vpack.c.b16 %v1593, %v1592
    %v1870 = vpack.c.b16 %v1595, %v1594
    %v1871 = vpack.c.b16 %v1597, %v1596
    %v1872 = vpack.c.b16 %v1599, %v1598
    %v1873 = vpack.c.b16 %v1601, %v1600
    %v1874 = vpack.c.b16 %v1603, %v1602
    %v1875 = vpack.c.b16 %v1605, %v1604
    %v1876 = vpack.c.b16 %v1607, %v1606
    %v1877 = vpack.c.b16 %v1609, %v1608
    %v1878 = vpack.c.b16 %v1611, %v1610
    %v1879 = vpack.c.b16 %v1613, %v1612
    %v1880 = vpack.c.b16 %v1615, %v1614
    %v1881 = vpack.c.b16 %v1617, %v1616
    %v1882 = vpack.c.b16 %v1619, %v1618
    %v1883 = vpack.c.b16 %v1621, %v1620
    %v1884 = vpack.c.b16 %v1623, %v1622
    %v1885 = vpack.c.b16 %v1625, %v1624
    %v1886 = vpack.c.b16 %v1627, %v1626
    %v1887 = vpack.c.b16 %v1629, %v1628
    %v1888 = vpack.c.b16 %v1631, %v1630
    %v1889 = vpack.c.b16 %v1633, %v1632
    %2146 = vmatpush.bf16.msra.mxu0 %v1641
    %2147 = vmatpush.bf16.msra.mxu0 %v1640
    %2148 = vmatpush.bf16.msra.mxu0 %v1639
    %2149 = vmatpush.bf16.msra.mxu0 %v1638
    %2150 = vmatpush.bf16.msra.mxu0 %v1637
    %2151 = vmatpush.bf16.msra.mxu0 %v1636
    %2152 = vmatpush.bf16.msra.mxu0 %v1635
    %2153 = vmatpush.bf16.msra.mxu0 %v1634
    %2154 = vmatmul.bf16.gmra.mxu0 %v540
    %v2155 = vpop.f32.mrf.mxu0
    %v2156 = vadd.f32 0.0, %v2155
    %v2157 = vpop.f32.mrf.mxu0
    %2158 = vdwg.mxu0
    %2159 = vmatpush.bf16.msra.mxu0 %v1649
    %2160 = vmatpush.bf16.msra.mxu0 %v1648
    %2161 = vmatpush.bf16.msra.mxu0 %v1647
    %2162 = vmatpush.bf16.msra.mxu0 %v1646
    %2163 = vmatpush.bf16.msra.mxu0 %v1645
    %2164 = vmatpush.bf16.msra.mxu0 %v1644
    %2165 = vmatpush.bf16.msra.mxu0 %v1643
    %2166 = vmatpush.bf16.msra.mxu0 %v1642
    %2167 = vmatmul.bf16.gmra.mxu0 %v541
    %v2168 = vpop.f32.mrf.mxu0
    %v2169 = vadd.f32 %v2156, %v2168
    %v2170 = vpop.f32.mrf.mxu0
    %2171 = vdwg.mxu0
    %2172 = vmatpush.bf16.msra.mxu0 %v1657
    %2173 = vmatpush.bf16.msra.mxu0 %v1656
    %2174 = vmatpush.bf16.msra.mxu0 %v1655
    %2175 = vmatpush.bf16.msra.mxu0 %v1654
    %2176 = vmatpush.bf16.msra.mxu0 %v1653
    %2177 = vmatpush.bf16.msra.mxu0 %v1652
    %2178 = vmatpush.bf16.msra.mxu0 %v1651
    %2179 = vmatpush.bf16.msra.mxu0 %v1650
    %2180 = vmatmul.bf16.gmra.mxu0 %v542
    %v2181 = vpop.f32.mrf.mxu0
    %v2182 = vadd.f32 %v2169, %v2181
    %v2183 = vpop.f32.mrf.mxu0
    %2184 = vdwg.mxu0
    %2185 = vmatpush.bf16.msra.mxu0 %v1665
    %2186 = vmatpush.bf16.msra.mxu0 %v1664
    %2187 = vmatpush.bf16.msra.mxu0 %v1663
    %2188 = vmatpush.bf16.msra.mxu0 %v1662
    %2189 = vmatpush.bf16.msra.mxu0 %v1661
    %2190 = vmatpush.bf16.msra.mxu0 %v1660
    %2191 = vmatpush.bf16.msra.mxu0 %v1659
    %2192 = vmatpush.bf16.msra.mxu0 %v1658
    %2193 = vmatmul.bf16.gmra.mxu0 %v543
    %v2194 = vpop.f32.mrf.mxu0
    %v2195 = vadd.f32 %v2182, %v2194
    %v2196 = vpop.f32.mrf.mxu0
    %2197 = vdwg.mxu0
    %2198 = vmatpush.bf16.msra.mxu0 %v1673
    %2199 = vmatpush.bf16.msra.mxu0 %v1672
    %2200 = vmatpush.bf16.msra.mxu0 %v1671
    %2201 = vmatpush.bf16.msra.mxu0 %v1670
    %2202 = vmatpush.bf16.msra.mxu0 %v1669
    %2203 = vmatpush.bf16.msra.mxu0 %v1668
    %2204 = vmatpush.bf16.msra.mxu0 %v1667
    %2205 = vmatpush.bf16.msra.mxu0 %v1666
    %2206 = vmatmul.bf16.gmra.mxu0 %v544
    %v2207 = vpop.f32.mrf.mxu0
    %v2208 = vadd.f32 %v2195, %v2207
    %v2209 = vpop.f32.mrf.mxu0
    %2210 = vdwg.mxu0
    %2211 = vmatpush.bf16.msra.mxu0 %v1681
    %2212 = vmatpush.bf16.msra.mxu0 %v1680
    %2213 = vmatpush.bf16.msra.mxu0 %v1679
    %2214 = vmatpush.bf16.msra.mxu0 %v1678
    %2215 = vmatpush.bf16.msra.mxu0 %v1677
    %2216 = vmatpush.bf16.msra.mxu0 %v1676
    %2217 = vmatpush.bf16.msra.mxu0 %v1675
    %2218 = vmatpush.bf16.msra.mxu0 %v1674
    %2219 = vmatmul.bf16.gmra.mxu0 %v545
    %v2220 = vpop.f32.mrf.mxu0
    %v2221 = vadd.f32 %v2208, %v2220
    %v2222 = vpop.f32.mrf.mxu0
    %2223 = vdwg.mxu0
    %2224 = vmatpush.bf16.msra.mxu0 %v1689
    %2225 = vmatpush.bf16.msra.mxu0 %v1688
    %2226 = vmatpush.bf16.msra.mxu0 %v1687
    %2227 = vmatpush.bf16.msra.mxu0 %v1686
    %2228 = vmatpush.bf16.msra.mxu0 %v1685
    %2229 = vmatpush.bf16.msra.mxu0 %v1684
    %2230 = vmatpush.bf16.msra.mxu0 %v1683
    %2231 = vmatpush.bf16.msra.mxu0 %v1682
    %2232 = vmatmul.bf16.gmra.mxu0 %v546
    %v2233 = vpop.f32.mrf.mxu0
    %v2234 = vadd.f32 %v2221, %v2233
    %v2235 = vpop.f32.mrf.mxu0
    %2236 = vdwg.mxu0
    %2237 = vmatpush.bf16.msra.mxu0 %v1697
    %2238 = vmatpush.bf16.msra.mxu0 %v1696
    %2239 = vmatpush.bf16.msra.mxu0 %v1695
    %2240 = vmatpush.bf16.msra.mxu0 %v1694
    %2241 = vmatpush.bf16.msra.mxu0 %v1693
    %2242 = vmatpush.bf16.msra.mxu0 %v1692
    %2243 = vmatpush.bf16.msra.mxu0 %v1691
    %2244 = vmatpush.bf16.msra.mxu0 %v1690
    %2245 = vmatmul.bf16.gmra.mxu0 %v547
    %v2246 = vpop.f32.mrf.mxu0
    %v2247 = vadd.f32 %v2234, %v2246
    %v2248 = vpop.f32.mrf.mxu0
    %2249 = vdwg.mxu0
    %2250 = vmatpush.bf16.msra.mxu0 %v1705
    %2251 = vmatpush.bf16.msra.mxu0 %v1704
    %2252 = vmatpush.bf16.msra.mxu0 %v1703
    %2253 = vmatpush.bf16.msra.mxu0 %v1702
    %2254 = vmatpush.bf16.msra.mxu0 %v1701
    %2255 = vmatpush.bf16.msra.mxu0 %v1700
    %2256 = vmatpush.bf16.msra.mxu0 %v1699
    %2257 = vmatpush.bf16.msra.mxu0 %v1698
    %2258 = vmatmul.bf16.gmra.mxu0 %v550
    %v2259 = vpop.f32.mrf.mxu0
    %v2260 = vadd.f32 %v2247, %v2259
    %v2261 = vpop.f32.mrf.mxu0
    %2262 = vdwg.mxu0
    %2263 = vmatpush.bf16.msra.mxu0 %v1713
    %2264 = vmatpush.bf16.msra.mxu0 %v1712
    %2265 = vmatpush.bf16.msra.mxu0 %v1711
    %2266 = vmatpush.bf16.msra.mxu0 %v1710
    %2267 = vmatpush.bf16.msra.mxu0 %v1709
    %2268 = vmatpush.bf16.msra.mxu0 %v1708
    %2269 = vmatpush.bf16.msra.mxu0 %v1707
    %2270 = vmatpush.bf16.msra.mxu0 %v1706
    %2271 = vmatmul.bf16.gmra.mxu0 %v551
    %v2272 = vpop.f32.mrf.mxu0
    %v2273 = vadd.f32 %v2260, %v2272
    %v2274 = vpop.f32.mrf.mxu0
    %2275 = vdwg.mxu0
    %2276 = vmatpush.bf16.msra.mxu0 %v1721
    %2277 = vmatpush.bf16.msra.mxu0 %v1720
    %2278 = vmatpush.bf16.msra.mxu0 %v1719
    %2279 = vmatpush.bf16.msra.mxu0 %v1718
    %2280 = vmatpush.bf16.msra.mxu0 %v1717
    %2281 = vmatpush.bf16.msra.mxu0 %v1716
    %2282 = vmatpush.bf16.msra.mxu0 %v1715
    %2283 = vmatpush.bf16.msra.mxu0 %v1714
    %2284 = vmatmul.bf16.gmra.mxu0 %v552
    %v2285 = vpop.f32.mrf.mxu0
    %v2286 = vadd.f32 %v2273, %v2285
    %v2287 = vpop.f32.mrf.mxu0
    %2288 = vdwg.mxu0
    %2289 = vmatpush.bf16.msra.mxu0 %v1729
    %2290 = vmatpush.bf16.msra.mxu0 %v1728
    %2291 = vmatpush.bf16.msra.mxu0 %v1727
    %2292 = vmatpush.bf16.msra.mxu0 %v1726
    %2293 = vmatpush.bf16.msra.mxu0 %v1725
    %2294 = vmatpush.bf16.msra.mxu0 %v1724
    %2295 = vmatpush.bf16.msra.mxu0 %v1723
    %2296 = vmatpush.bf16.msra.mxu0 %v1722
    %2297 = vmatmul.bf16.gmra.mxu0 %v553
    %v2298 = vpop.f32.mrf.mxu0
    %v2299 = vadd.f32 %v2286, %v2298
    %v2300 = vpop.f32.mrf.mxu0
    %2301 = vdwg.mxu0
    %2302 = vmatpush.bf16.msra.mxu0 %v1737
    %2303 = vmatpush.bf16.msra.mxu0 %v1736
    %2304 = vmatpush.bf16.msra.mxu0 %v1735
    %2305 = vmatpush.bf16.msra.mxu0 %v1734
    %2306 = vmatpush.bf16.msra.mxu0 %v1733
    %2307 = vmatpush.bf16.msra.mxu0 %v1732
    %2308 = vmatpush.bf16.msra.mxu0 %v1731
    %2309 = vmatpush.bf16.msra.mxu0 %v1730
    %2310 = vmatmul.bf16.gmra.mxu0 %v554
    %v2311 = vpop.f32.mrf.mxu0
    %v2312 = vadd.f32 %v2299, %v2311
    %v2313 = vpop.f32.mrf.mxu0
    %2314 = vdwg.mxu0
    %2315 = vmatpush.bf16.msra.mxu0 %v1745
    %2316 = vmatpush.bf16.msra.mxu0 %v1744
    %2317 = vmatpush.bf16.msra.mxu0 %v1743
    %2318 = vmatpush.bf16.msra.mxu0 %v1742
    %2319 = vmatpush.bf16.msra.mxu0 %v1741
    %2320 = vmatpush.bf16.msra.mxu0 %v1740
    %2321 = vmatpush.bf16.msra.mxu0 %v1739
    %2322 = vmatpush.bf16.msra.mxu0 %v1738
    %2323 = vmatmul.bf16.gmra.mxu0 %v555
    %v2324 = vpop.f32.mrf.mxu0
    %v2325 = vadd.f32 %v2312, %v2324
    %v2326 = vpop.f32.mrf.mxu0
    %2327 = vdwg.mxu0
    %2328 = vmatpush.bf16.msra.mxu0 %v1753
    %2329 = vmatpush.bf16.msra.mxu0 %v1752
    %2330 = vmatpush.bf16.msra.mxu0 %v1751
    %2331 = vmatpush.bf16.msra.mxu0 %v1750
    %2332 = vmatpush.bf16.msra.mxu0 %v1749
    %2333 = vmatpush.bf16.msra.mxu0 %v1748
    %2334 = vmatpush.bf16.msra.mxu0 %v1747
    %2335 = vmatpush.bf16.msra.mxu0 %v1746
    %2336 = vmatmul.bf16.gmra.mxu0 %v556
    %v2337 = vpop.f32.mrf.mxu0
    %v2338 = vadd.f32 %v2325, %v2337
    %v2339 = vpop.f32.mrf.mxu0
    %2340 = vdwg.mxu0
    %2341 = vmatpush.bf16.msra.mxu0 %v1761
    %2342 = vmatpush.bf16.msra.mxu0 %v1760
    %2343 = vmatpush.bf16.msra.mxu0 %v1759
    %2344 = vmatpush.bf16.msra.mxu0 %v1758
    %2345 = vmatpush.bf16.msra.mxu0 %v1757
    %2346 = vmatpush.bf16.msra.mxu0 %v1756
    %2347 = vmatpush.bf16.msra.mxu0 %v1755
    %2348 = vmatpush.bf16.msra.mxu0 %v1754
    %2349 = vmatmul.bf16.gmra.mxu0 %v557
    %v2350 = vpop.f32.mrf.mxu0
    %v2351 = vadd.f32 %v2338, %v2350
    %v2352 = vpop.f32.mrf.mxu0
    %2353 = vdwg.mxu0
    %2354 = vmatpush.bf16.msra.mxu0 %v1769
    %2355 = vmatpush.bf16.msra.mxu0 %v1768
    %2356 = vmatpush.bf16.msra.mxu0 %v1767
    %2357 = vmatpush.bf16.msra.mxu0 %v1766
    %2358 = vmatpush.bf16.msra.mxu0 %v1765
    %2359 = vmatpush.bf16.msra.mxu0 %v1764
    %2360 = vmatpush.bf16.msra.mxu0 %v1763
    %2361 = vmatpush.bf16.msra.mxu0 %v1762
    %2362 = vmatmul.bf16.gmra.mxu0 %v560
    %v2363 = vpop.f32.mrf.mxu0
    %v2364 = vadd.f32 %v2351, %v2363
    %v2365 = vpop.f32.mrf.mxu0
    %2366 = vdwg.mxu0
    %2367 = vmatpush.bf16.msra.mxu0 %v1777
    %2368 = vmatpush.bf16.msra.mxu0 %v1776
    %2369 = vmatpush.bf16.msra.mxu0 %v1775
    %2370 = vmatpush.bf16.msra.mxu0 %v1774
    %2371 = vmatpush.bf16.msra.mxu0 %v1773
    %2372 = vmatpush.bf16.msra.mxu0 %v1772
    %2373 = vmatpush.bf16.msra.mxu0 %v1771
    %2374 = vmatpush.bf16.msra.mxu0 %v1770
    %2375 = vmatmul.bf16.gmra.mxu0 %v561
    %v2376 = vpop.f32.mrf.mxu0
    %v2377 = vadd.f32 %v2364, %v2376
    %v2378 = vpop.f32.mrf.mxu0
    %2379 = vdwg.mxu0
    %2380 = vmatpush.bf16.msra.mxu0 %v1785
    %2381 = vmatpush.bf16.msra.mxu0 %v1784
    %2382 = vmatpush.bf16.msra.mxu0 %v1783
    %2383 = vmatpush.bf16.msra.mxu0 %v1782
    %2384 = vmatpush.bf16.msra.mxu0 %v1781
    %2385 = vmatpush.bf16.msra.mxu0 %v1780
    %2386 = vmatpush.bf16.msra.mxu0 %v1779
    %2387 = vmatpush.bf16.msra.mxu0 %v1778
    %2388 = vmatmul.bf16.gmra.mxu0 %v562
    %v2389 = vpop.f32.mrf.mxu0
    %v2390 = vadd.f32 %v2377, %v2389
    %v2391 = vpop.f32.mrf.mxu0
    %2392 = vdwg.mxu0
    %2393 = vmatpush.bf16.msra.mxu0 %v1793
    %2394 = vmatpush.bf16.msra.mxu0 %v1792
    %2395 = vmatpush.bf16.msra.mxu0 %v1791
    %2396 = vmatpush.bf16.msra.mxu0 %v1790
    %2397 = vmatpush.bf16.msra.mxu0 %v1789
    %2398 = vmatpush.bf16.msra.mxu0 %v1788
    %2399 = vmatpush.bf16.msra.mxu0 %v1787
    %2400 = vmatpush.bf16.msra.mxu0 %v1786
    %2401 = vmatmul.bf16.gmra.mxu0 %v563
    %v2402 = vpop.f32.mrf.mxu0
    %v2403 = vadd.f32 %v2390, %v2402
    %v2404 = vpop.f32.mrf.mxu0
    %2405 = vdwg.mxu0
    %2406 = vmatpush.bf16.msra.mxu0 %v1801
    %2407 = vmatpush.bf16.msra.mxu0 %v1800
    %2408 = vmatpush.bf16.msra.mxu0 %v1799
    %2409 = vmatpush.bf16.msra.mxu0 %v1798
    %2410 = vmatpush.bf16.msra.mxu0 %v1797
    %2411 = vmatpush.bf16.msra.mxu0 %v1796
    %2412 = vmatpush.bf16.msra.mxu0 %v1795
    %2413 = vmatpush.bf16.msra.mxu0 %v1794
    %2414 = vmatmul.bf16.gmra.mxu0 %v564
    %v2415 = vpop.f32.mrf.mxu0
    %v2416 = vadd.f32 %v2403, %v2415
    %v2417 = vpop.f32.mrf.mxu0
    %2418 = vdwg.mxu0
    %2419 = vmatpush.bf16.msra.mxu0 %v1809
    %2420 = vmatpush.bf16.msra.mxu0 %v1808
    %2421 = vmatpush.bf16.msra.mxu0 %v1807
    %2422 = vmatpush.bf16.msra.mxu0 %v1806
    %2423 = vmatpush.bf16.msra.mxu0 %v1805
    %2424 = vmatpush.bf16.msra.mxu0 %v1804
    %2425 = vmatpush.bf16.msra.mxu0 %v1803
    %2426 = vmatpush.bf16.msra.mxu0 %v1802
    %2427 = vmatmul.bf16.gmra.mxu0 %v565
    %v2428 = vpop.f32.mrf.mxu0
    %v2429 = vadd.f32 %v2416, %v2428
    %v2430 = vpop.f32.mrf.mxu0
    %2431 = vdwg.mxu0
    %2432 = vmatpush.bf16.msra.mxu0 %v1817
    %2433 = vmatpush.bf16.msra.mxu0 %v1816
    %2434 = vmatpush.bf16.msra.mxu0 %v1815
    %2435 = vmatpush.bf16.msra.mxu0 %v1814
    %2436 = vmatpush.bf16.msra.mxu0 %v1813
    %2437 = vmatpush.bf16.msra.mxu0 %v1812
    %2438 = vmatpush.bf16.msra.mxu0 %v1811
    %2439 = vmatpush.bf16.msra.mxu0 %v1810
    %2440 = vmatmul.bf16.gmra.mxu0 %v566
    %v2441 = vpop.f32.mrf.mxu0
    %v2442 = vadd.f32 %v2429, %v2441
    %v2443 = vpop.f32.mrf.mxu0
    %2444 = vdwg.mxu0
    %2445 = vmatpush.bf16.msra.mxu0 %v1825
    %2446 = vmatpush.bf16.msra.mxu0 %v1824
    %2447 = vmatpush.bf16.msra.mxu0 %v1823
    %2448 = vmatpush.bf16.msra.mxu0 %v1822
    %2449 = vmatpush.bf16.msra.mxu0 %v1821
    %2450 = vmatpush.bf16.msra.mxu0 %v1820
    %2451 = vmatpush.bf16.msra.mxu0 %v1819
    %2452 = vmatpush.bf16.msra.mxu0 %v1818
    %2453 = vmatmul.bf16.gmra.mxu0 %v567
    %v2454 = vpop.f32.mrf.mxu0
    %v2455 = vadd.f32 %v2442, %v2454
    %v2456 = vpop.f32.mrf.mxu0
    %2457 = vdwg.mxu0
    %2458 = vmatpush.bf16.msra.mxu0 %v1833
    %2459 = vmatpush.bf16.msra.mxu0 %v1832
    %2460 = vmatpush.bf16.msra.mxu0 %v1831
    %2461 = vmatpush.bf16.msra.mxu0 %v1830
    %2462 = vmatpush.bf16.msra.mxu0 %v1829
    %2463 = vmatpush.bf16.msra.mxu0 %v1828
    %2464 = vmatpush.bf16.msra.mxu0 %v1827
    %2465 = vmatpush.bf16.msra.mxu0 %v1826
    %2466 = vmatmul.bf16.gmra.mxu0 %v570
    %v2467 = vpop.f32.mrf.mxu0
    %v2468 = vadd.f32 %v2455, %v2467
    %v2469 = vpop.f32.mrf.mxu0
    %2470 = vdwg.mxu0
    %2471 = vmatpush.bf16.msra.mxu0 %v1841
    %2472 = vmatpush.bf16.msra.mxu0 %v1840
    %2473 = vmatpush.bf16.msra.mxu0 %v1839
    %2474 = vmatpush.bf16.msra.mxu0 %v1838
    %2475 = vmatpush.bf16.msra.mxu0 %v1837
    %2476 = vmatpush.bf16.msra.mxu0 %v1836
    %2477 = vmatpush.bf16.msra.mxu0 %v1835
    %2478 = vmatpush.bf16.msra.mxu0 %v1834
    %2479 = vmatmul.bf16.gmra.mxu0 %v571
    %v2480 = vpop.f32.mrf.mxu0
    %v2481 = vadd.f32 %v2468, %v2480
    %v2482 = vpop.f32.mrf.mxu0
    %2483 = vdwg.mxu0
    %2484 = vmatpush.bf16.msra.mxu0 %v1849
    %2485 = vmatpush.bf16.msra.mxu0 %v1848
    %2486 = vmatpush.bf16.msra.mxu0 %v1847
    %2487 = vmatpush.bf16.msra.mxu0 %v1846
    %2488 = vmatpush.bf16.msra.mxu0 %v1845
    %2489 = vmatpush.bf16.msra.mxu0 %v1844
    %2490 = vmatpush.bf16.msra.mxu0 %v1843
    %2491 = vmatpush.bf16.msra.mxu0 %v1842
    %2492 = vmatmul.bf16.gmra.mxu0 %v572
    %v2493 = vpop.f32.mrf.mxu0
    %v2494 = vadd.f32 %v2481, %v2493
    %v2495 = vpop.f32.mrf.mxu0
    %2496 = vdwg.mxu0
    %2497 = vmatpush.bf16.msra.mxu0 %v1857
    %2498 = vmatpush.bf16.msra.mxu0 %v1856
    %2499 = vmatpush.bf16.msra.mxu0 %v1855
    %2500 = vmatpush.bf16.msra.mxu0 %v1854
    %2501 = vmatpush.bf16.msra.mxu0 %v1853
    %2502 = vmatpush.bf16.msra.mxu0 %v1852
    %2503 = vmatpush.bf16.msra.mxu0 %v1851
    %2504 = vmatpush.bf16.msra.mxu0 %v1850
    %2505 = vmatmul.bf16.gmra.mxu0 %v573
    %v2506 = vpop.f32.mrf.mxu0
    %v2507 = vadd.f32 %v2494, %v2506
    %v2508 = vpop.f32.mrf.mxu0
    %2509 = vdwg.mxu0
    %2510 = vmatpush.bf16.msra.mxu0 %v1865
    %2511 = vmatpush.bf16.msra.mxu0 %v1864
    %2512 = vmatpush.bf16.msra.mxu0 %v1863
    %2513 = vmatpush.bf16.msra.mxu0 %v1862
    %2514 = vmatpush.bf16.msra.mxu0 %v1861
    %2515 = vmatpush.bf16.msra.mxu0 %v1860
    %2516 = vmatpush.bf16.msra.mxu0 %v1859
    %2517 = vmatpush.bf16.msra.mxu0 %v1858
    %2518 = vmatmul.bf16.gmra.mxu0 %v574
    %v2519 = vpop.f32.mrf.mxu0
    %v2520 = vadd.f32 %v2507, %v2519
    %v2521 = vpop.f32.mrf.mxu0
    %2522 = vdwg.mxu0
    %2523 = vmatpush.bf16.msra.mxu0 %v1873
    %2524 = vmatpush.bf16.msra.mxu0 %v1872
    %2525 = vmatpush.bf16.msra.mxu0 %v1871
    %2526 = vmatpush.bf16.msra.mxu0 %v1870
    %2527 = vmatpush.bf16.msra.mxu0 %v1869
    %2528 = vmatpush.bf16.msra.mxu0 %v1868
    %2529 = vmatpush.bf16.msra.mxu0 %v1867
    %2530 = vmatpush.bf16.msra.mxu0 %v1866
    %2531 = vmatmul.bf16.gmra.mxu0 %v575
    %v2532 = vpop.f32.mrf.mxu0
    %v2533 = vadd.f32 %v2520, %v2532
    %v2534 = vpop.f32.mrf.mxu0
    %2535 = vdwg.mxu0
    %2536 = vmatpush.bf16.msra.mxu0 %v1881
    %2537 = vmatpush.bf16.msra.mxu0 %v1880
    %2538 = vmatpush.bf16.msra.mxu0 %v1879
    %2539 = vmatpush.bf16.msra.mxu0 %v1878
    %2540 = vmatpush.bf16.msra.mxu0 %v1877
    %2541 = vmatpush.bf16.msra.mxu0 %v1876
    %2542 = vmatpush.bf16.msra.mxu0 %v1875
    %2543 = vmatpush.bf16.msra.mxu0 %v1874
    %2544 = vmatmul.bf16.gmra.mxu0 %v576
    %v2545 = vpop.f32.mrf.mxu0
    %v2546 = vadd.f32 %v2533, %v2545
    %v2547 = vpop.f32.mrf.mxu0
    %2548 = vdwg.mxu0
    %2549 = vmatpush.bf16.msra.mxu0 %v1889
    %2550 = vmatpush.bf16.msra.mxu0 %v1888
    %2551 = vmatpush.bf16.msra.mxu0 %v1887
    %2552 = vmatpush.bf16.msra.mxu0 %v1886
    %2553 = vmatpush.bf16.msra.mxu0 %v1885
    %2554 = vmatpush.bf16.msra.mxu0 %v1884
    %2555 = vmatpush.bf16.msra.mxu0 %v1883
    %2556 = vmatpush.bf16.msra.mxu0 %v1882
    %2557 = vmatmul.bf16.gmra.mxu0 %v577
    %v2558 = vpop.f32.mrf.mxu0
    %v2559 = vadd.f32 %v2546, %v2558
    %v2560 = vpop.f32.mrf.mxu0
    %2561 = vdwg.mxu0
    %v2562 = vadd.f32 %v21, %v2559
    %vm2563 = vcmask 517120
    %2564 = vst.msk [vmem:[#allocation2] sm:$0x3] %vm2563, %v2562
    // Predicated region
    $region18: #{simple1dcnn_forward.3} parent=1 // pred_check
      %p2565 = pneg %p15
    $region19: #{simple1dcnn_forward.3} parent=1 // pred_check_branch
      %2567 = sbr.rel (%p2565) target = $region21
    $region20: #{simple1dcnn_forward.3} parent=1 // pred_region
      %v2568 = vld [vmem:[#allocation2] sm:$0x3]
      %v2569 = vld [vmem:[%s2] sm:$0x1]
      %v2571 = vperm.slane %v2569, 0
      %v2573 = vadd.f32 %v2568, %v2571
      %2574 = vst.msk [vmem:[#allocation3] sm:$0x3] %vm2563, %v2573
    $region21: #{simple1dcnn_forward.3} parent=1 // pred_fallthru
      _
    // Predicated region
    $region22: #{simple1dcnn_forward.3} parent=1 // pred_check
      _
    $region23: #{simple1dcnn_forward.3} parent=1 // pred_check_branch
      %2576 = sbr.rel (0) target = $region25
    $region24: #{simple1dcnn_forward.3} parent=1 // pred_region
      %2578 = vsyncadd [#allocation4], 0
      %s2580 = sshll.u32 [#allocation3], 4
      %s2581 = int_to_ptr.vmem [resolvable:$true] %s2580
      %s2582 = sshll.u32 %s3, 4
      %s2583 = int_to_ptr.hbm [resolvable:$true] %s2582
      %2585 = dma.vmem_to_hbm [thread:$0]  %s2581, 32, %s2583, [#allocation4]
    $region25: #{simple1dcnn_forward.3} parent=1 // pred_fallthru
      _
    // Predicated region
    $region26: #{simple1dcnn_forward.3} parent=1 // pred_check
      _
    $region27: #{simple1dcnn_forward.3} parent=1 // pred_check_branch
      %2587 = sbr.rel (0) target = $region29
    $region28: #{simple1dcnn_forward.3} parent=1 // pred_region
      %2589 = dma.done [#allocation4], 32
    $region29: #{simple1dcnn_forward.3} parent=1 // pred_fallthru
      _
    %2590 = vsyncpa [#allocation4], 1

</llo_original>
